<compile_context>
chip_gen: v7x
topology: tpu7x:2x2x1
jax: 0.10.0
libtpu: 0.0.40
codegen_flags: <defaults>
</compile_context>

<pallas_src>
import jax
import jax.numpy as jnp
from jax.experimental import pallas as pl
from jax.experimental.pallas import tpu as pltpu

HIDDEN = 768            # BERT hidden size
FC_IN = HIDDEN * 4      # 3072 = concat of 3 CLS vectors + pooler output
FC_HID = 128
NUM_CLASS = 4
FC_PAD = 128            # lane-dense padded output width for the second matmul
BATCH = 2


def _fused_head_kernel(x_ref, w1_ref, b1_ref, w2_ref, b2_ref, out_ref):
    """One grid step = one classifier head: relu(x @ W1 + b1) @ W2p + b2p.

    x_ref:  (B, 3072)   bf16   pre-concatenated BERT features for this head
    w1_ref: (3072, 128) bf16
    b1_ref: (1, 128)    f32
    w2_ref: (128, 128)  f32    (columns >= num_class are zero padding)
    b2_ref: (1, 128)    f32    (entries >= num_class are zero padding)
    out_ref:(B, 128)    f32    lane-dense; sliced to num_class outside
    """
    # TODO(synk): nn.Dropout(0.1) is identity at inference time and is omitted.
    h = jnp.dot(x_ref[...], w1_ref[...], preferred_element_type=jnp.float32)
    h = jnp.maximum(h + b1_ref[...], 0.0)                       # ReLU
    y = jnp.dot(h, w2_ref[...], preferred_element_type=jnp.float32) + b2_ref[...]
    out_ref[...] = y.astype(out_ref.dtype)


def _run_heads(x_cat, w1, b1, w2p, b2p):
    """x_cat: (n_heads, B, 3072) bf16; weights stacked with leading head axis."""
    n_heads, B, _ = x_cat.shape

    def head_spec(*tail):
        # Leading head axis squeezed out of the kernel view.
        return pl.BlockSpec((None,) + tail, lambda h: (h, 0, 0))

    out = pl.pallas_call(
        _fused_head_kernel,
        out_shape=jax.ShapeDtypeStruct((n_heads, B, FC_PAD), jnp.float32),
        grid=(n_heads,),
        in_specs=[
            head_spec(B, FC_IN),        # x_cat
            head_spec(FC_IN, FC_HID),   # W1
            head_spec(1, FC_HID),       # b1
            head_spec(FC_HID, FC_PAD),  # W2 (padded)
            head_spec(1, FC_PAD),       # b2 (padded)
        ],
        out_specs=head_spec(B, FC_PAD),
        compiler_params=pltpu.CompilerParams(
            dimension_semantics=("parallel",),   # v7x: one head per TensorCore
            vmem_limit_bytes=8 << 20,            # ~1.7 MiB double-buffered; plenty
        ),
    )(x_cat, w1, b1, w2p, b2p)
    return out[:, :, :NUM_CLASS]


def smpnet_forward(params, x1=None, x2=None):
    """Mirrors SMPNet.forward: returns a tuple with one entry per provided input.

    x1 / x2 are tuples of BERT-derived features:
      (hidden_states[-1][:,0], hidden_states[-2][:,0],
       hidden_states[-3][:,0], pooler_output), each shaped (B, 768).
    """
    # TODO(synk): BertModel.from_pretrained backbone is not reproducible
    # in-script; the kernel consumes its CLS hidden states + pooler as inputs.
    heads = []
    if x1 is not None:
        heads.append(("fc1", x1))
    if x2 is not None:
        heads.append(("fc2", x2))
    if not heads:
        return ()

    # Wrapper-side concat (one (B, 3072) slab per head) + bf16 cast of the
    # memory-dominant operands; f32 accumulation happens inside the kernel.
    x_cat = jnp.stack(
        [jnp.concatenate(feats, axis=-1).astype(jnp.bfloat16) for _, feats in heads],
        axis=0)                                                     # (n, B, 3072)
    w1 = jnp.stack([params[f"{name}_w1"].astype(jnp.bfloat16) for name, _ in heads])
    b1 = jnp.stack([params[f"{name}_b1"].reshape(1, FC_HID) for name, _ in heads])
    w2p = jnp.stack([
        jnp.pad(params[f"{name}_w2"], ((0, 0), (0, FC_PAD - NUM_CLASS)))
        for name, _ in heads])                                      # (n, 128, 128)
    b2p = jnp.stack([
        jnp.pad(params[f"{name}_b2"], (0, FC_PAD - NUM_CLASS)).reshape(1, FC_PAD)
        for name, _ in heads])                                      # (n, 1, 128)

    out = _run_heads(x_cat, w1, b1, w2p, b2p)                        # (n, B, 4)
    return tuple(out[i] for i in range(len(heads)))


def _reference_head(feats, w1, b1, w2, b2):
    # Reference on the same bf16-quantized operands the kernel consumes.
    concat = jnp.concatenate(feats, axis=-1).astype(jnp.bfloat16).astype(jnp.float32)
    w1q = w1.astype(jnp.bfloat16).astype(jnp.float32)
    h = jnp.maximum(concat @ w1q + b1, 0.0)
    return h @ w2 + b2


if __name__ == "__main__":
    key = jax.random.PRNGKey(0)
    keys = jax.random.split(key, 16)

    def init_linear(kw, kb, fan_in, fan_out):
        bound = 1.0 / (fan_in ** 0.5)
        w = jax.random.uniform(kw, (fan_in, fan_out), jnp.float32, -bound, bound)
        b = jax.random.uniform(kb, (fan_out,), jnp.float32, -bound, bound)
        return w, b

    params = {}
    params["fc1_w1"], params["fc1_b1"] = init_linear(keys[0], keys[1], FC_IN, FC_HID)
    params["fc1_w2"], params["fc1_b2"] = init_linear(keys[2], keys[3], FC_HID, NUM_CLASS)
    params["fc2_w1"], params["fc2_b1"] = init_linear(keys[4], keys[5], FC_IN, FC_HID)
    params["fc2_w2"], params["fc2_b2"] = init_linear(keys[6], keys[7], FC_HID, NUM_CLASS)

    # Deterministic stand-ins for the BERT feature outputs.
    x1_feats = tuple(
        jax.random.normal(keys[8 + i], (BATCH, HIDDEN), jnp.float32) for i in range(4)
    )
    x2_feats = tuple(
        jax.random.normal(keys[12 + i], (BATCH, HIDDEN), jnp.float32) for i in range(4)
    )

    out1, out2 = smpnet_forward(params, x1=x1_feats, x2=x2_feats)
    jax.block_until_ready((out1, out2))

    # Also exercise the single-input path (grid=(1,)).
    (out1_only,) = smpnet_forward(params, x1=x1_feats)
    jax.block_until_ready(out1_only)

    # Correctness check against a pure-JAX reference on the same bf16 operands.
    ref1 = _reference_head(x1_feats, params["fc1_w1"], params["fc1_b1"],
                           params["fc1_w2"], params["fc1_b2"])
    ref2 = _reference_head(x2_feats, params["fc2_w1"], params["fc2_b1"],
                           params["fc2_w2"], params["fc2_b2"])
    assert out1.shape == (BATCH, NUM_CLASS) and out2.shape == (BATCH, NUM_CLASS)
    assert jnp.allclose(out1, ref1, atol=1e-2, rtol=1e-2)
    assert jnp.allclose(out2, ref2, atol=1e-2, rtol=1e-2)
    assert jnp.allclose(out1_only, out1, atol=1e-5, rtol=1e-5)

    print("KERNEL_OK")
</pallas_src>

<mosaic_0001>
module attributes {stable_mosaic.version = 11 : i64} {
  func.func @_fused_head_kernel(%arg0: i32, %arg1: memref<1x2x3072xbf16, #tpu.memory_space<vmem>>, %arg2: memref<1x3072x128xbf16, #tpu.memory_space<vmem>>, %arg3: memref<1x1x128xf32, #tpu.memory_space<vmem>>, %arg4: memref<1x128x128xf32, #tpu.memory_space<vmem>>, %arg5: memref<1x1x128xf32, #tpu.memory_space<vmem>>, %arg6: memref<1x2x128xf32, #tpu.memory_space<vmem>>) attributes {dimension_semantics = [#tpu.dimension_semantics<parallel>], iteration_bounds = array<i64: 2>, scalar_prefetch = 0 : i64, scratch_operands = 0 : i64, tpu.core_type = #tpu.core_type<tc>, window_params = [{transform_indices = @transform_0, window_bounds = array<i64: 1, 2, 3072>}, {transform_indices = @transform_1, window_bounds = array<i64: 1, 3072, 128>}, {transform_indices = @transform_2, window_bounds = array<i64: 1, 1, 128>}, {transform_indices = @transform_3, window_bounds = array<i64: 1, 128, 128>}, {transform_indices = @transform_4, window_bounds = array<i64: 1, 1, 128>}, {transform_indices = @transform_5, window_bounds = array<i64: 1, 2, 128>}]} {
    %c0 = arith.constant 0 : index
    %c0_0 = arith.constant 0 : index
    %c0_1 = arith.constant 0 : index
    %0 = vector.load %arg1[%c0, %c0_0, %c0_1] : memref<1x2x3072xbf16, #tpu.memory_space<vmem>>, vector<1x2x3072xbf16>
    %1 = vector.shape_cast %0 : vector<1x2x3072xbf16> to vector<2x3072xbf16>
    %c0_2 = arith.constant 0 : index
    %c0_3 = arith.constant 0 : index
    %c0_4 = arith.constant 0 : index
    %2 = vector.load %arg2[%c0_2, %c0_3, %c0_4] : memref<1x3072x128xbf16, #tpu.memory_space<vmem>>, vector<1x3072x128xbf16>
    %3 = vector.shape_cast %2 : vector<1x3072x128xbf16> to vector<3072x128xbf16>
    %cst = arith.constant dense<0.000000e+00> : vector<2x128xf32>
    %4 = tpu.matmul %1, %3, %cst {dimension_numbers = #tpu.dot_dimension_numbers<[1], [0], [0], [1], [0, 0, 1, 1], [], []>} : vector<2x3072xbf16>, vector<3072x128xbf16>, vector<2x128xf32> -> vector<2x128xf32>
    %c0_5 = arith.constant 0 : index
    %c0_6 = arith.constant 0 : index
    %c0_7 = arith.constant 0 : index
    %5 = vector.load %arg3[%c0_5, %c0_6, %c0_7] : memref<1x1x128xf32, #tpu.memory_space<vmem>>, vector<1x1x128xf32>
    %6 = vector.shape_cast %5 : vector<1x1x128xf32> to vector<1x128xf32>
    %7 = vector.broadcast %6 : vector<1x128xf32> to vector<2x128xf32>
    %8 = arith.addf %4, %7 : vector<2x128xf32>
    %cst_8 = arith.constant 0.000000e+00 : f32
    %9 = vector.broadcast %cst_8 : f32 to vector<2x128xf32>
    %10 = arith.maximumf %8, %9 : vector<2x128xf32>
    %c0_9 = arith.constant 0 : index
    %c0_10 = arith.constant 0 : index
    %c0_11 = arith.constant 0 : index
    %11 = vector.load %arg4[%c0_9, %c0_10, %c0_11] : memref<1x128x128xf32, #tpu.memory_space<vmem>>, vector<1x128x128xf32>
    %12 = vector.shape_cast %11 : vector<1x128x128xf32> to vector<128x128xf32>
    %cst_12 = arith.constant dense<0.000000e+00> : vector<2x128xf32>
    %13 = tpu.matmul %10, %12, %cst_12 {dimension_numbers = #tpu.dot_dimension_numbers<[1], [0], [0], [1], [0, 0, 1, 1], [], []>} : vector<2x128xf32>, vector<128x128xf32>, vector<2x128xf32> -> vector<2x128xf32>
    %c0_13 = arith.constant 0 : index
    %c0_14 = arith.constant 0 : index
    %c0_15 = arith.constant 0 : index
    %14 = vector.load %arg5[%c0_13, %c0_14, %c0_15] : memref<1x1x128xf32, #tpu.memory_space<vmem>>, vector<1x1x128xf32>
    %15 = vector.shape_cast %14 : vector<1x1x128xf32> to vector<1x128xf32>
    %16 = vector.broadcast %15 : vector<1x128xf32> to vector<2x128xf32>
    %17 = arith.addf %13, %16 : vector<2x128xf32>
    %c0_16 = arith.constant 0 : index
    %c0_17 = arith.constant 0 : index
    %c0_18 = arith.constant 0 : index
    %18 = vector.load %arg6[%c0_16, %c0_17, %c0_18] : memref<1x2x128xf32, #tpu.memory_space<vmem>>, vector<1x2x128xf32>
    %19 = vector.shape_cast %18 : vector<1x2x128xf32> to vector<2x128xf32>
    %20 = vector.shape_cast %17 : vector<2x128xf32> to vector<1x2x128xf32>
    tpu.vector_store %arg6[%c0_16, %c0_17, %c0_18], %20 {strides = array<i32>} : memref<1x2x128xf32, #tpu.memory_space<vmem>>, vector<1x2x128xf32>,
    return
  }
  func.func @transform_0(%arg0: i32) -> (i32, i32, i32) {
    %c0_i32 = arith.constant 0 : i32
    %c0_i32_0 = arith.constant 0 : i32
    %c0_i32_1 = arith.constant 0 : i32
    return %arg0, %c0_i32, %c0_i32_0 : i32, i32, i32
  }
  func.func @transform_1(%arg0: i32) -> (i32, i32, i32) {
    %c0_i32 = arith.constant 0 : i32
    %c0_i32_0 = arith.constant 0 : i32
    %c0_i32_1 = arith.constant 0 : i32
    return %arg0, %c0_i32, %c0_i32_0 : i32, i32, i32
  }
  func.func @transform_2(%arg0: i32) -> (i32, i32, i32) {
    %c0_i32 = arith.constant 0 : i32
    %c0_i32_0 = arith.constant 0 : i32
    %c0_i32_1 = arith.constant 0 : i32
    return %arg0, %c0_i32, %c0_i32_0 : i32, i32, i32
  }
  func.func @transform_3(%arg0: i32) -> (i32, i32, i32) {
    %c0_i32 = arith.constant 0 : i32
    %c0_i32_0 = arith.constant 0 : i32
    %c0_i32_1 = arith.constant 0 : i32
    return %arg0, %c0_i32, %c0_i32_0 : i32, i32, i32
  }
  func.func @transform_4(%arg0: i32) -> (i32, i32, i32) {
    %c0_i32 = arith.constant 0 : i32
    %c0_i32_0 = arith.constant 0 : i32
    %c0_i32_1 = arith.constant 0 : i32
    return %arg0, %c0_i32, %c0_i32_0 : i32, i32, i32
  }
  func.func @transform_5(%arg0: i32) -> (i32, i32, i32) {
    %c0_i32 = arith.constant 0 : i32
    %c0_i32_0 = arith.constant 0 : i32
    %c0_i32_1 = arith.constant 0 : i32
    return %arg0, %c0_i32, %c0_i32_0 : i32, i32, i32
  }
}

</mosaic_0001>

<llo_original>
// kernel: tpu_custom_call.1
$region0: #{tpu_custom_call.1}
  #allocation0 [shape = 'u32[]', space=smem, size = 0x4, offset = 0x4, fixed_abs, tag = 'smem constant byte address 0x4 - core index']
  #allocation1 [shape = 'u32[144,128]{1,0:T(1,128)}', space=vmem, size = 0x12000, scoped, tag = 'internal scratch']
  %s0 = inlined_call_operand.hbm [shape: bf16[2,2,3072], index: 0, kind: input, shape index: {}]
  %s1 = inlined_call_operand.hbm [shape: bf16[2,3072,128], index: 1, kind: input, shape index: {}]
  %s2 = inlined_call_operand.hbm [shape: f32[2,1,128], index: 2, kind: input, shape index: {}]
  %s3 = inlined_call_operand.hbm [shape: f32[2,128,128], index: 3, kind: input, shape index: {}]
  %s4 = inlined_call_operand.hbm [shape: f32[2,1,128], index: 4, kind: input, shape index: {}]
  %s5 = inlined_call_operand.hbm [shape: f32[2,2,128], index: 5, kind: output, shape index: {}]
  %s6 = sld [smem:[#allocation0]]
  $region73: #{tpu_custom_call.1} parent=0
    _
  %s8 = ssub.s32 1, %s6
  %s9 = scalar_select 0, %s8, %s6
  $region1: #{tpu_custom_call.1} parent=0
    #allocation2 [shape = 'u8[24576]{0}', space=vmem, size = 0x6000, scoped, tag = 'input window, operand 0']
    #allocation3 [shape = 's32[2]{0}', space=sflag, size = 0x8, scoped, tag = 'scoped memory for tpu_custom_call.1']
    #allocation4 [shape = 's32[2]{0}', space=sflag, size = 0x8, scoped, tag = 'scoped memory for tpu_custom_call.1']
    #allocation5 [shape = 'u8[1572864]{0}', space=vmem, size = 0x180000, scoped, tag = 'input window, operand 1']
    #allocation6 [shape = 's32[2]{0}', space=sflag, size = 0x8, scoped, tag = 'scoped memory for tpu_custom_call.1']
    #allocation7 [shape = 'u8[1024]{0}', space=vmem, size = 0x400, scoped, tag = 'input window, operand 2']
    #allocation8 [shape = 'u8[131072]{0}', space=vmem, size = 0x20000, scoped, tag = 'input window, operand 3']
    #allocation9 [shape = 's32[2]{0}', space=sflag, size = 0x8, scoped, tag = 'scoped memory for tpu_custom_call.1']
    #allocation10 [shape = 'u8[1024]{0}', space=vmem, size = 0x400, scoped, tag = 'input window, operand 4']
    #allocation11 [shape = 'u8[2048]{0}', space=vmem, size = 0x800, scoped, tag = 'output window, operand 0']
    %10 = vsyncpa [#allocation3], 0
    %s11 = scalar_lea.sflag [#allocation3], 1
    %12 = vsyncpa %s11, 0
    %13 = vsyncpa [#allocation6], 0
    %s14 = scalar_lea.sflag [#allocation6], 1
    %15 = vsyncpa %s14, 0
    %16 = vsyncpa [#allocation9], 0
    %s17 = scalar_lea.sflag [#allocation9], 1
    %18 = vsyncpa %s17, 0
    %19 = vsyncpa [#allocation4], 0
    %s20 = scalar_lea.sflag [#allocation4], 1
    %21 = vsyncpa %s20, 0
    loop: start=0, step=1, limit=4
    $region2: #{tpu_custom_call.1} parent=1 // loop_pre_header
      _
    $region3: #{tpu_custom_call.1} parent=1 // loop_header
      %s23 = sphi 0, %s27
      %p24 = scmp.ge.s32.totalorder %s23, 4
      %s33 = sphi 0, %s35
      %s36 = sphi 0, %s33
      %s37 = sphi 0, %s36
      %s53 = sphi 0, %s37
      %s59 = sphi 0, %s61
      %s62 = sphi 0, %s59
      %s63 = sphi 0, %s62
      %s79 = sphi 0, %s63
      %s85 = sphi 0, %s87
      %s88 = sphi 0, %s85
      %s89 = sphi 0, %s88
      %s105 = sphi 0, %s89
      %s111 = sphi 0, %s113
      %s114 = sphi 0, %s111
      %s115 = sphi 0, %s114
      %s131 = sphi 0, %s115
      %s137 = sphi 0, %s139
      %s140 = sphi 0, %s137
      %s141 = sphi 0, %s140
      %s157 = sphi 0, %s141
      %s163 = sphi 0, %s165
      %s166 = sphi 0, %s163
      %s167 = sphi 0, %s166
      %s183 = sphi 0, %s167
    $region4: #{tpu_custom_call.1} parent=1 // loop_header_branch
      %26 = sbr.rel (%p24) target = $region8
    $region5: #{tpu_custom_call.1} parent=1 // loop_body
      %s28 = ssub.s32 %s23, 1
      %s29 = ssub.s32 %s23, 2
      %s30 = sadd.s32 %s23, 1
      %s31 = ssub.s32 %s23, %s30
      %p32 = scmp.eq.s32.totalorder %s31, 0
      %s34 = sadd.s32 %s33, 1
      %s35 = scalar_select %p32, %s33, %s34
      %p38 = pneg %p32
      %p39 = scmp.eq.s32.totalorder %s23, 1
      %p40 = por %p38, %p39
      %p41 = scmp.ne.s32.totalorder %s33, %s36
      %p42 = scmp.eq.s32.totalorder %s23, 0
      %p43 = por %p41, %p42
      %p44 = scmp.ne.s32.totalorder %s33, %s36
      %p45 = scmp.eq.s32.totalorder %s28, 1
      %p46 = por %p44, %p45
      %p47 = scmp.ne.s32.totalorder %s36, %s37
      %p48 = scmp.eq.s32.totalorder %s28, 0
      %p49 = por %p47, %p48
      %p50 = scmp.ne.s32.totalorder %s36, %s37
      %p51 = scmp.eq.s32.totalorder %s29, 1
      %p52 = por %p50, %p51
      %p54 = scmp.ne.s32.totalorder %s37, %s53
      %p55 = scmp.eq.s32.totalorder %s29, 0
      %p56 = por %p54, %p55
      %s57 = ssub.s32 %s23, %s30
      %p58 = scmp.eq.s32.totalorder %s57, 0
      %s60 = sadd.s32 %s59, 1
      %s61 = scalar_select %p58, %s59, %s60
      %p64 = pneg %p58
      %p65 = scmp.eq.s32.totalorder %s23, 1
      %p66 = por %p64, %p65
      %p67 = scmp.ne.s32.totalorder %s59, %s62
      %p68 = scmp.eq.s32.totalorder %s23, 0
      %p69 = por %p67, %p68
      %p70 = scmp.ne.s32.totalorder %s59, %s62
      %p71 = scmp.eq.s32.totalorder %s28, 1
      %p72 = por %p70, %p71
      %p73 = scmp.ne.s32.totalorder %s62, %s63
      %p74 = scmp.eq.s32.totalorder %s28, 0
      %p75 = por %p73, %p74
      %p76 = scmp.ne.s32.totalorder %s62, %s63
      %p77 = scmp.eq.s32.totalorder %s29, 1
      %p78 = por %p76, %p77
      %p80 = scmp.ne.s32.totalorder %s63, %s79
      %p81 = scmp.eq.s32.totalorder %s29, 0
      %p82 = por %p80, %p81
      %s83 = ssub.s32 %s23, %s30
      %p84 = scmp.eq.s32.totalorder %s83, 0
      %s86 = sadd.s32 %s85, 1
      %s87 = scalar_select %p84, %s85, %s86
      %p90 = pneg %p84
      %p91 = scmp.eq.s32.totalorder %s23, 1
      %p92 = por %p90, %p91
      %p93 = scmp.ne.s32.totalorder %s85, %s88
      %p94 = scmp.eq.s32.totalorder %s23, 0
      %p95 = por %p93, %p94
      %p96 = scmp.ne.s32.totalorder %s85, %s88
      %p97 = scmp.eq.s32.totalorder %s28, 1
      %p98 = por %p96, %p97
      %p99 = scmp.ne.s32.totalorder %s88, %s89
      %p100 = scmp.eq.s32.totalorder %s28, 0
      %p101 = por %p99, %p100
      %p102 = scmp.ne.s32.totalorder %s88, %s89
      %p103 = scmp.eq.s32.totalorder %s29, 1
      %p104 = por %p102, %p103
      %p106 = scmp.ne.s32.totalorder %s89, %s105
      %p107 = scmp.eq.s32.totalorder %s29, 0
      %p108 = por %p106, %p107
      %s109 = ssub.s32 %s23, %s30
      %p110 = scmp.eq.s32.totalorder %s109, 0
      %s112 = sadd.s32 %s111, 1
      %s113 = scalar_select %p110, %s111, %s112
      %p116 = pneg %p110
      %p117 = scmp.eq.s32.totalorder %s23, 1
      %p118 = por %p116, %p117
      %p119 = scmp.ne.s32.totalorder %s111, %s114
      %p120 = scmp.eq.s32.totalorder %s23, 0
      %p121 = por %p119, %p120
      %p122 = scmp.ne.s32.totalorder %s111, %s114
      %p123 = scmp.eq.s32.totalorder %s28, 1
      %p124 = por %p122, %p123
      %p125 = scmp.ne.s32.totalorder %s114, %s115
      %p126 = scmp.eq.s32.totalorder %s28, 0
      %p127 = por %p125, %p126
      %p128 = scmp.ne.s32.totalorder %s114, %s115
      %p129 = scmp.eq.s32.totalorder %s29, 1
      %p130 = por %p128, %p129
      %p132 = scmp.ne.s32.totalorder %s115, %s131
      %p133 = scmp.eq.s32.totalorder %s29, 0
      %p134 = por %p132, %p133
      %s135 = ssub.s32 %s23, %s30
      %p136 = scmp.eq.s32.totalorder %s135, 0
      %s138 = sadd.s32 %s137, 1
      %s139 = scalar_select %p136, %s137, %s138
      %p142 = pneg %p136
      %p143 = scmp.eq.s32.totalorder %s23, 1
      %p144 = por %p142, %p143
      %p145 = scmp.ne.s32.totalorder %s137, %s140
      %p146 = scmp.eq.s32.totalorder %s23, 0
      %p147 = por %p145, %p146
      %p148 = scmp.ne.s32.totalorder %s137, %s140
      %p149 = scmp.eq.s32.totalorder %s28, 1
      %p150 = por %p148, %p149
      %p151 = scmp.ne.s32.totalorder %s140, %s141
      %p152 = scmp.eq.s32.totalorder %s28, 0
      %p153 = por %p151, %p152
      %p154 = scmp.ne.s32.totalorder %s140, %s141
      %p155 = scmp.eq.s32.totalorder %s29, 1
      %p156 = por %p154, %p155
      %p158 = scmp.ne.s32.totalorder %s141, %s157
      %p159 = scmp.eq.s32.totalorder %s29, 0
      %p160 = por %p158, %p159
      %s161 = ssub.s32 %s23, %s30
      %p162 = scmp.eq.s32.totalorder %s161, 0
      %s164 = sadd.s32 %s163, 1
      %s165 = scalar_select %p162, %s163, %s164
      %p168 = pneg %p162
      %p169 = scmp.eq.s32.totalorder %s23, 1
      %p170 = por %p168, %p169
      %p171 = scmp.ne.s32.totalorder %s163, %s166
      %p172 = scmp.eq.s32.totalorder %s23, 0
      %p173 = por %p171, %p172
      %p174 = scmp.ne.s32.totalorder %s163, %s166
      %p175 = scmp.eq.s32.totalorder %s28, 1
      %p176 = por %p174, %p175
      %p177 = scmp.ne.s32.totalorder %s166, %s167
      %p178 = scmp.eq.s32.totalorder %s28, 0
      %p179 = por %p177, %p178
      %p180 = scmp.ne.s32.totalorder %s166, %s167
      %p181 = scmp.eq.s32.totalorder %s29, 1
      %p182 = por %p180, %p181
      %p184 = scmp.ne.s32.totalorder %s167, %s183
      %p185 = scmp.eq.s32.totalorder %s29, 0
      %p186 = por %p184, %p185
      %p187 = scmp.le.s32.totalorder 1, %s23
      %p188 = scmp.lt.s32.totalorder %s23, 3
      %p189 = pnand %p187, %p188
      %p190 = pneg %p189
      // Predicated region
      $region9: #{tpu_custom_call.1} parent=5 // pred_check
        _
      $region10: #{tpu_custom_call.1} parent=5 // pred_check_branch
        %192 = sbr.rel (%p189) target = $region12
      $region11: #{tpu_custom_call.1} parent=5 // pred_region
        %s193 = ssub.s32 %s23, 1
      $region12: #{tpu_custom_call.1} parent=5 // pred_fallthru
        _
      %p194 = scmp.lt.s32.totalorder %s23, 2
      // Predicated region
      $region13: #{tpu_custom_call.1} parent=5 // pred_check
        %p195 = pneg %p194
      $region14: #{tpu_custom_call.1} parent=5 // pred_check_branch
        %197 = sbr.rel (%p195) target = $region16
      $region15: #{tpu_custom_call.1} parent=5 // pred_region
        // Predicated region
        $region17: #{tpu_custom_call.1} parent=15 // pred_check
          %p198 = pneg %p43
        $region18: #{tpu_custom_call.1} parent=15 // pred_check_branch
          %200 = sbr.rel (%p198) target = $region20
        $region19: #{tpu_custom_call.1} parent=15 // pred_region
          %s201 = sand.u32 %s33, 1
          %s202 = scalar_lea.sflag [#allocation3], %s201
          %s203 = sand.u32 %s33, 1
          %s204 = smul.addr %s203, 24
          %s205 = scalar_lea.vmem [#allocation2], %s204
          %s207 = ssub.s32 384, 384
          %208 = vsyncadd %s202, %s207
          %s209 = smul.addr %s23, 24
          %s210 = smul.addr %s209, 16
          %s211 = scalar_lea.hbm %s0, %s210
          %s213 = sshll.u32 %s205, 4
          %s214 = int_to_ptr.vmem [resolvable:$true] %s213
          %216 = dma.hbm_to_vmem [thread:$0]  %s211, 384, %s214, %s202
        $region20: #{tpu_custom_call.1} parent=15 // pred_fallthru
          _
        // Predicated region
        $region21: #{tpu_custom_call.1} parent=15 // pred_check
          %p217 = pneg %p69
        $region22: #{tpu_custom_call.1} parent=15 // pred_check_branch
          %219 = sbr.rel (%p217) target = $region24
        $region23: #{tpu_custom_call.1} parent=15 // pred_region
          %s220 = sand.u32 %s23, 1
          %s221 = scalar_lea.sflag [#allocation6], %s220
          %s222 = sand.u32 %s59, 1
          %s223 = smul.addr %s222, 1536
          %s224 = scalar_lea.vmem [#allocation5], %s223
          %s226 = ssub.s32 24576, 24576
          %227 = vsyncadd %s221, %s226
          %s228 = smul.addr %s23, 384
          %s229 = smul.addr %s228, 64
          %s230 = scalar_lea.hbm %s1, %s229
          %s231 = sshll.u32 %s224, 4
          %s232 = int_to_ptr.vmem [resolvable:$true] %s231
          %237 = dma.hbm_to_vmem [thread:$0]  %s230, 24576, %s232, %s221, 64, 64, 4
        $region24: #{tpu_custom_call.1} parent=15 // pred_fallthru
          _
        // Predicated region
        $region25: #{tpu_custom_call.1} parent=15 // pred_check
          %p238 = pneg %p95
        $region26: #{tpu_custom_call.1} parent=15 // pred_check_branch
          %240 = sbr.rel (%p238) target = $region28
        $region27: #{tpu_custom_call.1} parent=15 // pred_region
          %s241 = sand.u32 %s23, 1
          %s242 = scalar_lea.sflag [#allocation6], %s241
          %s243 = sand.u32 %s85, 1
          %s244 = scalar_lea.vmem [#allocation7], %s243
          %s246 = ssub.s32 16, 16
          %247 = vsyncadd %s242, %s246
          %s248 = smul.addr %s23, 16
          %s249 = scalar_lea.hbm %s2, %s248
          %s251 = sshll.u32 %s244, 4
          %s252 = int_to_ptr.vmem [resolvable:$true] %s251
          %254 = dma.hbm_to_vmem [thread:$0]  %s249, 16, %s252, %s242
        $region28: #{tpu_custom_call.1} parent=15 // pred_fallthru
          _
        // Predicated region
        $region29: #{tpu_custom_call.1} parent=15 // pred_check
          %p255 = pneg %p121
        $region30: #{tpu_custom_call.1} parent=15 // pred_check_branch
          %257 = sbr.rel (%p255) target = $region32
        $region31: #{tpu_custom_call.1} parent=15 // pred_region
          %s258 = sand.u32 %s23, 1
          %s259 = scalar_lea.sflag [#allocation9], %s258
          %s260 = sand.u32 %s111, 1
          %s261 = smul.addr %s260, 128
          %s262 = scalar_lea.vmem [#allocation8], %s261
          %s264 = ssub.s32 2048, 2048
          %265 = vsyncadd %s259, %s264
          %s266 = smul.addr %s23, 16
          %s267 = smul.addr %s266, 128
          %s268 = scalar_lea.hbm %s3, %s267
          %s269 = sshll.u32 %s262, 4
          %s270 = int_to_ptr.vmem [resolvable:$true] %s269
          %275 = dma.hbm_to_vmem [thread:$0]  %s268, 2048, %s270, %s259, 128, 128, 8
        $region32: #{tpu_custom_call.1} parent=15 // pred_fallthru
          _
        // Predicated region
        $region33: #{tpu_custom_call.1} parent=15 // pred_check
          %p276 = pneg %p147
        $region34: #{tpu_custom_call.1} parent=15 // pred_check_branch
          %278 = sbr.rel (%p276) target = $region36
        $region35: #{tpu_custom_call.1} parent=15 // pred_region
          %s279 = sand.u32 %s23, 1
          %s280 = scalar_lea.sflag [#allocation9], %s279
          %s281 = sand.u32 %s137, 1
          %s282 = scalar_lea.vmem [#allocation10], %s281
          %s284 = ssub.s32 16, 16
          %285 = vsyncadd %s280, %s284
          %s286 = smul.addr %s23, 16
          %s287 = scalar_lea.hbm %s4, %s286
          %s289 = sshll.u32 %s282, 4
          %s290 = int_to_ptr.vmem [resolvable:$true] %s289
          %292 = dma.hbm_to_vmem [thread:$0]  %s287, 16, %s290, %s280
        $region36: #{tpu_custom_call.1} parent=15 // pred_fallthru
          _
      $region16: #{tpu_custom_call.1} parent=5 // pred_fallthru
        _
      %p293 = scmp.le.s32.totalorder 1, %s23
      %p294 = scmp.lt.s32.totalorder %s23, 3
      %p295 = pnand %p293, %p294
      %p296 = pneg %p295
      // Predicated region
      $region37: #{tpu_custom_call.1} parent=5 // pred_check
        _
      $region38: #{tpu_custom_call.1} parent=5 // pred_check_branch
        %298 = sbr.rel (%p295) target = $region40
      $region39: #{tpu_custom_call.1} parent=5 // pred_region
        %s299 = ssub.s32 %s23, 1
        %s300 = sand.u32 %s36, 1
        %s301 = scalar_lea.sflag [#allocation3], %s300
        %s302 = sand.u32 %s36, 1
        %s303 = smul.addr %s302, 24
        %s304 = scalar_lea.vmem [#allocation2], %s303
        // Predicated region
        $region41: #{tpu_custom_call.1} parent=39 // pred_check
          %p305 = pneg %p49
        $region42: #{tpu_custom_call.1} parent=39 // pred_check_branch
          %307 = sbr.rel (%p305) target = $region44
        $region43: #{tpu_custom_call.1} parent=39 // pred_region
          %308 = dma.done %s301, 384
        $region44: #{tpu_custom_call.1} parent=39 // pred_fallthru
          _
        %s309 = sand.u32 %s28, 1
        %s310 = scalar_lea.sflag [#allocation6], %s309
        %s311 = sand.u32 %s62, 1
        %s312 = smul.addr %s311, 1536
        %s313 = scalar_lea.vmem [#allocation5], %s312
        // Predicated region
        $region45: #{tpu_custom_call.1} parent=39 // pred_check
          %p314 = pneg %p75
        $region46: #{tpu_custom_call.1} parent=39 // pred_check_branch
          %316 = sbr.rel (%p314) target = $region48
        $region47: #{tpu_custom_call.1} parent=39 // pred_region
          %317 = dma.done %s310, 24576
        $region48: #{tpu_custom_call.1} parent=39 // pred_fallthru
          _
        %s318 = sand.u32 %s28, 1
        %s319 = scalar_lea.sflag [#allocation6], %s318
        %s320 = sand.u32 %s88, 1
        %s321 = scalar_lea.vmem [#allocation7], %s320
        // Predicated region
        $region49: #{tpu_custom_call.1} parent=39 // pred_check
          %p322 = pneg %p101
        $region50: #{tpu_custom_call.1} parent=39 // pred_check_branch
          %324 = sbr.rel (%p322) target = $region52
        $region51: #{tpu_custom_call.1} parent=39 // pred_region
          %325 = dma.done %s319, 16
        $region52: #{tpu_custom_call.1} parent=39 // pred_fallthru
          _
        %s326 = sand.u32 %s28, 1
        %s327 = scalar_lea.sflag [#allocation9], %s326
        %s328 = sand.u32 %s114, 1
        %s329 = smul.addr %s328, 128
        %s330 = scalar_lea.vmem [#allocation8], %s329
        // Predicated region
        $region53: #{tpu_custom_call.1} parent=39 // pred_check
          %p331 = pneg %p127
        $region54: #{tpu_custom_call.1} parent=39 // pred_check_branch
          %333 = sbr.rel (%p331) target = $region56
        $region55: #{tpu_custom_call.1} parent=39 // pred_region
          %334 = dma.done %s327, 2048
        $region56: #{tpu_custom_call.1} parent=39 // pred_fallthru
          _
        %s335 = sand.u32 %s28, 1
        %s336 = scalar_lea.sflag [#allocation9], %s335
        %s337 = sand.u32 %s140, 1
        %s338 = scalar_lea.vmem [#allocation10], %s337
        // Predicated region
        $region57: #{tpu_custom_call.1} parent=39 // pred_check
          %p339 = pneg %p153
        $region58: #{tpu_custom_call.1} parent=39 // pred_check_branch
          %341 = sbr.rel (%p339) target = $region60
        $region59: #{tpu_custom_call.1} parent=39 // pred_region
          %342 = dma.done %s336, 16
        $region60: #{tpu_custom_call.1} parent=39 // pred_fallthru
          _
        %s343 = sand.u32 %s36, 1
        %s344 = scalar_lea.sflag [#allocation3], %s343
        %s345 = sand.u32 %s36, 1
        %s346 = smul.addr %s345, 24
        %s347 = scalar_lea.vmem [#allocation2], %s346
        %p348 = pneg %p49
        %p349 = pneg %p46
        %s350 = sand.u32 %s28, 1
        %s351 = scalar_lea.sflag [#allocation6], %s350
        %s352 = sand.u32 %s62, 1
        %s353 = smul.addr %s352, 1536
        %s354 = scalar_lea.vmem [#allocation5], %s353
        %p355 = pneg %p75
        %p356 = pneg %p72
        %s357 = sand.u32 %s28, 1
        %s358 = scalar_lea.sflag [#allocation6], %s357
        %s359 = sand.u32 %s88, 1
        %s360 = scalar_lea.vmem [#allocation7], %s359
        %p361 = pneg %p101
        %p362 = pneg %p98
        %s363 = sand.u32 %s28, 1
        %s364 = scalar_lea.sflag [#allocation9], %s363
        %s365 = sand.u32 %s114, 1
        %s366 = smul.addr %s365, 128
        %s367 = scalar_lea.vmem [#allocation8], %s366
        %p368 = pneg %p127
        %p369 = pneg %p124
        %s370 = sand.u32 %s28, 1
        %s371 = scalar_lea.sflag [#allocation9], %s370
        %s372 = sand.u32 %s140, 1
        %s373 = scalar_lea.vmem [#allocation10], %s372
        %p374 = pneg %p153
        %p375 = pneg %p150
        %p376 = pneg %p179
        %p377 = pneg %p176
        %s378 = sand.u32 %s166, 1
        %s379 = scalar_lea.sflag [#allocation4], %s378
        %s380 = sand.u32 %s166, 1
        %s381 = smul.addr %s380, 2
        %s382 = scalar_lea.vmem [#allocation11], %s381
        %v384 = vld [vmem:[%s304] sm:$0xff]
        %v385 = vld [vmem:[%s304 + $0x8] sm:$0xff]
        %v386 = vld [vmem:[%s304 + $0x10] sm:$0xff]
        %v387 = vld [vmem:[%s313] sm:$0xf]
        %v388 = vld [vmem:[%s313 + $0x4] sm:$0xf]
        %v389 = vld [vmem:[%s313 + $0x8] sm:$0xf]
        %v390 = vld [vmem:[%s313 + $0xc] sm:$0xf]
        %v391 = vld [vmem:[%s313 + $0x10] sm:$0xf]
        %v392 = vld [vmem:[%s313 + $0x14] sm:$0xf]
        %v393 = vld [vmem:[%s313 + $0x18] sm:$0xf]
        %v394 = vld [vmem:[%s313 + $0x1c] sm:$0xf]
        %v395 = vld [vmem:[%s313 + $0x20] sm:$0xf]
        %v396 = vld [vmem:[%s313 + $0x24] sm:$0xf]
        %v397 = vld [vmem:[%s313 + $0x28] sm:$0xf]
        %v398 = vld [vmem:[%s313 + $0x2c] sm:$0xf]
        %v399 = vld [vmem:[%s313 + $0x30] sm:$0xf]
        %v400 = vld [vmem:[%s313 + $0x34] sm:$0xf]
        %v401 = vld [vmem:[%s313 + $0x38] sm:$0xf]
        %v402 = vld [vmem:[%s313 + $0x3c] sm:$0xf]
        %v403 = vld [vmem:[%s313 + $0x40] sm:$0xf]
        %v404 = vld [vmem:[%s313 + $0x44] sm:$0xf]
        %v405 = vld [vmem:[%s313 + $0x48] sm:$0xf]
        %v406 = vld [vmem:[%s313 + $0x4c] sm:$0xf]
        %v407 = vld [vmem:[%s313 + $0x50] sm:$0xf]
        %v408 = vld [vmem:[%s313 + $0x54] sm:$0xf]
        %v409 = vld [vmem:[%s313 + $0x58] sm:$0xf]
        %v410 = vld [vmem:[%s313 + $0x5c] sm:$0xf]
        %v411 = vld [vmem:[%s313 + $0x60] sm:$0xf]
        %v412 = vld [vmem:[%s313 + $0x64] sm:$0xf]
        %v413 = vld [vmem:[%s313 + $0x68] sm:$0xf]
        %v414 = vld [vmem:[%s313 + $0x6c] sm:$0xf]
        %v415 = vld [vmem:[%s313 + $0x70] sm:$0xf]
        %v416 = vld [vmem:[%s313 + $0x74] sm:$0xf]
        %v417 = vld [vmem:[%s313 + $0x78] sm:$0xf]
        %v418 = vld [vmem:[%s313 + $0x7c] sm:$0xf]
        %v419 = vld [vmem:[%s313 + $0x80] sm:$0xf]
        %v420 = vld [vmem:[%s313 + $0x84] sm:$0xf]
        %v421 = vld [vmem:[%s313 + $0x88] sm:$0xf]
        %v422 = vld [vmem:[%s313 + $0x8c] sm:$0xf]
        %v423 = vld [vmem:[%s313 + $0x90] sm:$0xf]
        %v424 = vld [vmem:[%s313 + $0x94] sm:$0xf]
        %v425 = vld [vmem:[%s313 + $0x98] sm:$0xf]
        %v426 = vld [vmem:[%s313 + $0x9c] sm:$0xf]
        %v427 = vld [vmem:[%s313 + $0xa0] sm:$0xf]
        %v428 = vld [vmem:[%s313 + $0xa4] sm:$0xf]
        %v429 = vld [vmem:[%s313 + $0xa8] sm:$0xf]
        %v430 = vld [vmem:[%s313 + $0xac] sm:$0xf]
        %v431 = vld [vmem:[%s313 + $0xb0] sm:$0xf]
        %v432 = vld [vmem:[%s313 + $0xb4] sm:$0xf]
        %v433 = vld [vmem:[%s313 + $0xb8] sm:$0xf]
        %v434 = vld [vmem:[%s313 + $0xbc] sm:$0xf]
        %v435 = vld [vmem:[%s313 + $0xc0] sm:$0xf]
        %v436 = vld [vmem:[%s313 + $0xc4] sm:$0xf]
        %v437 = vld [vmem:[%s313 + $0xc8] sm:$0xf]
        %v438 = vld [vmem:[%s313 + $0xcc] sm:$0xf]
        %v439 = vld [vmem:[%s313 + $0xd0] sm:$0xf]
        %v440 = vld [vmem:[%s313 + $0xd4] sm:$0xf]
        %v441 = vld [vmem:[%s313 + $0xd8] sm:$0xf]
        %v442 = vld [vmem:[%s313 + $0xdc] sm:$0xf]
        %v443 = vld [vmem:[%s313 + $0xe0] sm:$0xf]
        %v444 = vld [vmem:[%s313 + $0xe4] sm:$0xf]
        %v445 = vld [vmem:[%s313 + $0xe8] sm:$0xf]
        %v446 = vld [vmem:[%s313 + $0xec] sm:$0xf]
        %v447 = vld [vmem:[%s313 + $0xf0] sm:$0xf]
        %v448 = vld [vmem:[%s313 + $0xf4] sm:$0xf]
        %v449 = vld [vmem:[%s313 + $0xf8] sm:$0xf]
        %v450 = vld [vmem:[%s313 + $0xfc] sm:$0xf]
        %v451 = vld [vmem:[%s313 + $0x100] sm:$0xf]
        %v452 = vld [vmem:[%s313 + $0x104] sm:$0xf]
        %v453 = vld [vmem:[%s313 + $0x108] sm:$0xf]
        %v454 = vld [vmem:[%s313 + $0x10c] sm:$0xf]
        %v455 = vld [vmem:[%s313 + $0x110] sm:$0xf]
        %v456 = vld [vmem:[%s313 + $0x114] sm:$0xf]
        %v457 = vld [vmem:[%s313 + $0x118] sm:$0xf]
        %v458 = vld [vmem:[%s313 + $0x11c] sm:$0xf]
        %v459 = vld [vmem:[%s313 + $0x120] sm:$0xf]
        %v460 = vld [vmem:[%s313 + $0x124] sm:$0xf]
        %v461 = vld [vmem:[%s313 + $0x128] sm:$0xf]
        %v462 = vld [vmem:[%s313 + $0x12c] sm:$0xf]
        %v463 = vld [vmem:[%s313 + $0x130] sm:$0xf]
        %v464 = vld [vmem:[%s313 + $0x134] sm:$0xf]
        %v465 = vld [vmem:[%s313 + $0x138] sm:$0xf]
        %v466 = vld [vmem:[%s313 + $0x13c] sm:$0xf]
        %v467 = vld [vmem:[%s313 + $0x140] sm:$0xf]
        %v468 = vld [vmem:[%s313 + $0x144] sm:$0xf]
        %v469 = vld [vmem:[%s313 + $0x148] sm:$0xf]
        %v470 = vld [vmem:[%s313 + $0x14c] sm:$0xf]
        %v471 = vld [vmem:[%s313 + $0x150] sm:$0xf]
        %v472 = vld [vmem:[%s313 + $0x154] sm:$0xf]
        %v473 = vld [vmem:[%s313 + $0x158] sm:$0xf]
        %v474 = vld [vmem:[%s313 + $0x15c] sm:$0xf]
        %v475 = vld [vmem:[%s313 + $0x160] sm:$0xf]
        %v476 = vld [vmem:[%s313 + $0x164] sm:$0xf]
        %v477 = vld [vmem:[%s313 + $0x168] sm:$0xf]
        %v478 = vld [vmem:[%s313 + $0x16c] sm:$0xf]
        %v479 = vld [vmem:[%s313 + $0x170] sm:$0xf]
        %v480 = vld [vmem:[%s313 + $0x174] sm:$0xf]
        %v481 = vld [vmem:[%s313 + $0x178] sm:$0xf]
        %v482 = vld [vmem:[%s313 + $0x17c] sm:$0xf]
        %v483 = vld [vmem:[%s313 + $0x180] sm:$0xf]
        %v484 = vld [vmem:[%s313 + $0x184] sm:$0xf]
        %v485 = vld [vmem:[%s313 + $0x188] sm:$0xf]
        %v486 = vld [vmem:[%s313 + $0x18c] sm:$0xf]
        %v487 = vld [vmem:[%s313 + $0x190] sm:$0xf]
        %v488 = vld [vmem:[%s313 + $0x194] sm:$0xf]
        %v489 = vld [vmem:[%s313 + $0x198] sm:$0xf]
        %v490 = vld [vmem:[%s313 + $0x19c] sm:$0xf]
        %v491 = vld [vmem:[%s313 + $0x1a0] sm:$0xf]
        %v492 = vld [vmem:[%s313 + $0x1a4] sm:$0xf]
        %v493 = vld [vmem:[%s313 + $0x1a8] sm:$0xf]
        %v494 = vld [vmem:[%s313 + $0x1ac] sm:$0xf]
        %v495 = vld [vmem:[%s313 + $0x1b0] sm:$0xf]
        %v496 = vld [vmem:[%s313 + $0x1b4] sm:$0xf]
        %v497 = vld [vmem:[%s313 + $0x1b8] sm:$0xf]
        %v498 = vld [vmem:[%s313 + $0x1bc] sm:$0xf]
        %v499 = vld [vmem:[%s313 + $0x1c0] sm:$0xf]
        %v500 = vld [vmem:[%s313 + $0x1c4] sm:$0xf]
        %v501 = vld [vmem:[%s313 + $0x1c8] sm:$0xf]
        %v502 = vld [vmem:[%s313 + $0x1cc] sm:$0xf]
        %v503 = vld [vmem:[%s313 + $0x1d0] sm:$0xf]
        %v504 = vld [vmem:[%s313 + $0x1d4] sm:$0xf]
        %v505 = vld [vmem:[%s313 + $0x1d8] sm:$0xf]
        %v506 = vld [vmem:[%s313 + $0x1dc] sm:$0xf]
        %v507 = vld [vmem:[%s313 + $0x1e0] sm:$0xf]
        %v508 = vld [vmem:[%s313 + $0x1e4] sm:$0xf]
        %v509 = vld [vmem:[%s313 + $0x1e8] sm:$0xf]
        %v510 = vld [vmem:[%s313 + $0x1ec] sm:$0xf]
        %v511 = vld [vmem:[%s313 + $0x1f0] sm:$0xf]
        %v512 = vld [vmem:[%s313 + $0x1f4] sm:$0xf]
        %v513 = vld [vmem:[%s313 + $0x1f8] sm:$0xf]
        %v514 = vld [vmem:[%s313 + $0x1fc] sm:$0xf]
        %v515 = vld [vmem:[%s313 + $0x200] sm:$0xf]
        %v516 = vld [vmem:[%s313 + $0x204] sm:$0xf]
        %v517 = vld [vmem:[%s313 + $0x208] sm:$0xf]
        %v518 = vld [vmem:[%s313 + $0x20c] sm:$0xf]
        %v519 = vld [vmem:[%s313 + $0x210] sm:$0xf]
        %v520 = vld [vmem:[%s313 + $0x214] sm:$0xf]
        %v521 = vld [vmem:[%s313 + $0x218] sm:$0xf]
        %v522 = vld [vmem:[%s313 + $0x21c] sm:$0xf]
        %v523 = vld [vmem:[%s313 + $0x220] sm:$0xf]
        %v524 = vld [vmem:[%s313 + $0x224] sm:$0xf]
        %v525 = vld [vmem:[%s313 + $0x228] sm:$0xf]
        %v526 = vld [vmem:[%s313 + $0x22c] sm:$0xf]
        %v527 = vld [vmem:[%s313 + $0x230] sm:$0xf]
        %v528 = vld [vmem:[%s313 + $0x234] sm:$0xf]
        %v529 = vld [vmem:[%s313 + $0x238] sm:$0xf]
        %v530 = vld [vmem:[%s313 + $0x23c] sm:$0xf]
        %v531 = vld [vmem:[%s313 + $0x240] sm:$0xf]
        %v532 = vld [vmem:[%s313 + $0x244] sm:$0xf]
        %v533 = vld [vmem:[%s313 + $0x248] sm:$0xf]
        %v534 = vld [vmem:[%s313 + $0x24c] sm:$0xf]
        %v535 = vld [vmem:[%s313 + $0x250] sm:$0xf]
        %v536 = vld [vmem:[%s313 + $0x254] sm:$0xf]
        %v537 = vld [vmem:[%s313 + $0x258] sm:$0xf]
        %v538 = vld [vmem:[%s313 + $0x25c] sm:$0xf]
        %v539 = vld [vmem:[%s313 + $0x260] sm:$0xf]
        %v540 = vld [vmem:[%s313 + $0x264] sm:$0xf]
        %v541 = vld [vmem:[%s313 + $0x268] sm:$0xf]
        %v542 = vld [vmem:[%s313 + $0x26c] sm:$0xf]
        %v543 = vld [vmem:[%s313 + $0x270] sm:$0xf]
        %v544 = vld [vmem:[%s313 + $0x274] sm:$0xf]
        %v545 = vld [vmem:[%s313 + $0x278] sm:$0xf]
        %v546 = vld [vmem:[%s313 + $0x27c] sm:$0xf]
        %v547 = vld [vmem:[%s313 + $0x280] sm:$0xf]
        %v548 = vld [vmem:[%s313 + $0x284] sm:$0xf]
        %v549 = vld [vmem:[%s313 + $0x288] sm:$0xf]
        %v550 = vld [vmem:[%s313 + $0x28c] sm:$0xf]
        %v551 = vld [vmem:[%s313 + $0x290] sm:$0xf]
        %v552 = vld [vmem:[%s313 + $0x294] sm:$0xf]
        %v553 = vld [vmem:[%s313 + $0x298] sm:$0xf]
        %v554 = vld [vmem:[%s313 + $0x29c] sm:$0xf]
        %v555 = vld [vmem:[%s313 + $0x2a0] sm:$0xf]
        %v556 = vld [vmem:[%s313 + $0x2a4] sm:$0xf]
        %v557 = vld [vmem:[%s313 + $0x2a8] sm:$0xf]
        %v558 = vld [vmem:[%s313 + $0x2ac] sm:$0xf]
        %v559 = vld [vmem:[%s313 + $0x2b0] sm:$0xf]
        %v560 = vld [vmem:[%s313 + $0x2b4] sm:$0xf]
        %v561 = vld [vmem:[%s313 + $0x2b8] sm:$0xf]
        %v562 = vld [vmem:[%s313 + $0x2bc] sm:$0xf]
        %v563 = vld [vmem:[%s313 + $0x2c0] sm:$0xf]
        %v564 = vld [vmem:[%s313 + $0x2c4] sm:$0xf]
        %v565 = vld [vmem:[%s313 + $0x2c8] sm:$0xf]
        %v566 = vld [vmem:[%s313 + $0x2cc] sm:$0xf]
        %v567 = vld [vmem:[%s313 + $0x2d0] sm:$0xf]
        %v568 = vld [vmem:[%s313 + $0x2d4] sm:$0xf]
        %v569 = vld [vmem:[%s313 + $0x2d8] sm:$0xf]
        %v570 = vld [vmem:[%s313 + $0x2dc] sm:$0xf]
        %v571 = vld [vmem:[%s313 + $0x2e0] sm:$0xf]
        %v572 = vld [vmem:[%s313 + $0x2e4] sm:$0xf]
        %v573 = vld [vmem:[%s313 + $0x2e8] sm:$0xf]
        %v574 = vld [vmem:[%s313 + $0x2ec] sm:$0xf]
        %v575 = vld [vmem:[%s313 + $0x2f0] sm:$0xf]
        %v576 = vld [vmem:[%s313 + $0x2f4] sm:$0xf]
        %v577 = vld [vmem:[%s313 + $0x2f8] sm:$0xf]
        %v578 = vld [vmem:[%s313 + $0x2fc] sm:$0xf]
        %v579 = vld [vmem:[%s313 + $0x300] sm:$0xf]
        %v580 = vld [vmem:[%s313 + $0x304] sm:$0xf]
        %v581 = vld [vmem:[%s313 + $0x308] sm:$0xf]
        %v582 = vld [vmem:[%s313 + $0x30c] sm:$0xf]
        %v583 = vld [vmem:[%s313 + $0x310] sm:$0xf]
        %v584 = vld [vmem:[%s313 + $0x314] sm:$0xf]
        %v585 = vld [vmem:[%s313 + $0x318] sm:$0xf]
        %v586 = vld [vmem:[%s313 + $0x31c] sm:$0xf]
        %v587 = vld [vmem:[%s313 + $0x320] sm:$0xf]
        %v588 = vld [vmem:[%s313 + $0x324] sm:$0xf]
        %v589 = vld [vmem:[%s313 + $0x328] sm:$0xf]
        %v590 = vld [vmem:[%s313 + $0x32c] sm:$0xf]
        %v591 = vld [vmem:[%s313 + $0x330] sm:$0xf]
        %v592 = vld [vmem:[%s313 + $0x334] sm:$0xf]
        %v593 = vld [vmem:[%s313 + $0x338] sm:$0xf]
        %v594 = vld [vmem:[%s313 + $0x33c] sm:$0xf]
        %v595 = vld [vmem:[%s313 + $0x340] sm:$0xf]
        %v596 = vld [vmem:[%s313 + $0x344] sm:$0xf]
        %v597 = vld [vmem:[%s313 + $0x348] sm:$0xf]
        %v598 = vld [vmem:[%s313 + $0x34c] sm:$0xf]
        %v599 = vld [vmem:[%s313 + $0x350] sm:$0xf]
        %v600 = vld [vmem:[%s313 + $0x354] sm:$0xf]
        %v601 = vld [vmem:[%s313 + $0x358] sm:$0xf]
        %v602 = vld [vmem:[%s313 + $0x35c] sm:$0xf]
        %v603 = vld [vmem:[%s313 + $0x360] sm:$0xf]
        %v604 = vld [vmem:[%s313 + $0x364] sm:$0xf]
        %v605 = vld [vmem:[%s313 + $0x368] sm:$0xf]
        %v606 = vld [vmem:[%s313 + $0x36c] sm:$0xf]
        %v607 = vld [vmem:[%s313 + $0x370] sm:$0xf]
        %v608 = vld [vmem:[%s313 + $0x374] sm:$0xf]
        %v609 = vld [vmem:[%s313 + $0x378] sm:$0xf]
        %v610 = vld [vmem:[%s313 + $0x37c] sm:$0xf]
        %v611 = vld [vmem:[%s313 + $0x380] sm:$0xf]
        %v612 = vld [vmem:[%s313 + $0x384] sm:$0xf]
        %v613 = vld [vmem:[%s313 + $0x388] sm:$0xf]
        %v614 = vld [vmem:[%s313 + $0x38c] sm:$0xf]
        %v615 = vld [vmem:[%s313 + $0x390] sm:$0xf]
        %v616 = vld [vmem:[%s313 + $0x394] sm:$0xf]
        %v617 = vld [vmem:[%s313 + $0x398] sm:$0xf]
        %v618 = vld [vmem:[%s313 + $0x39c] sm:$0xf]
        %v619 = vld [vmem:[%s313 + $0x3a0] sm:$0xf]
        %v620 = vld [vmem:[%s313 + $0x3a4] sm:$0xf]
        %v621 = vld [vmem:[%s313 + $0x3a8] sm:$0xf]
        %v622 = vld [vmem:[%s313 + $0x3ac] sm:$0xf]
        %v623 = vld [vmem:[%s313 + $0x3b0] sm:$0xf]
        %v624 = vld [vmem:[%s313 + $0x3b4] sm:$0xf]
        %v625 = vld [vmem:[%s313 + $0x3b8] sm:$0xf]
        %v626 = vld [vmem:[%s313 + $0x3bc] sm:$0xf]
        %v627 = vld [vmem:[%s313 + $0x3c0] sm:$0xf]
        %v628 = vld [vmem:[%s313 + $0x3c4] sm:$0xf]
        %v629 = vld [vmem:[%s313 + $0x3c8] sm:$0xf]
        %v630 = vld [vmem:[%s313 + $0x3cc] sm:$0xf]
        %v631 = vld [vmem:[%s313 + $0x3d0] sm:$0xf]
        %v632 = vld [vmem:[%s313 + $0x3d4] sm:$0xf]
        %v633 = vld [vmem:[%s313 + $0x3d8] sm:$0xf]
        %v634 = vld [vmem:[%s313 + $0x3dc] sm:$0xf]
        %v635 = vld [vmem:[%s313 + $0x3e0] sm:$0xf]
        %v636 = vld [vmem:[%s313 + $0x3e4] sm:$0xf]
        %v637 = vld [vmem:[%s313 + $0x3e8] sm:$0xf]
        %v638 = vld [vmem:[%s313 + $0x3ec] sm:$0xf]
        %v639 = vld [vmem:[%s313 + $0x3f0] sm:$0xf]
        %v640 = vld [vmem:[%s313 + $0x3f4] sm:$0xf]
        %v641 = vld [vmem:[%s313 + $0x3f8] sm:$0xf]
        %v642 = vld [vmem:[%s313 + $0x3fc] sm:$0xf]
        %v643 = vld [vmem:[%s313 + $0x400] sm:$0xf]
        %v644 = vld [vmem:[%s313 + $0x404] sm:$0xf]
        %v645 = vld [vmem:[%s313 + $0x408] sm:$0xf]
        %v646 = vld [vmem:[%s313 + $0x40c] sm:$0xf]
        %v647 = vld [vmem:[%s313 + $0x410] sm:$0xf]
        %v648 = vld [vmem:[%s313 + $0x414] sm:$0xf]
        %v649 = vld [vmem:[%s313 + $0x418] sm:$0xf]
        %v650 = vld [vmem:[%s313 + $0x41c] sm:$0xf]
        %v651 = vld [vmem:[%s313 + $0x420] sm:$0xf]
        %v652 = vld [vmem:[%s313 + $0x424] sm:$0xf]
        %v653 = vld [vmem:[%s313 + $0x428] sm:$0xf]
        %v654 = vld [vmem:[%s313 + $0x42c] sm:$0xf]
        %v655 = vld [vmem:[%s313 + $0x430] sm:$0xf]
        %v656 = vld [vmem:[%s313 + $0x434] sm:$0xf]
        %v657 = vld [vmem:[%s313 + $0x438] sm:$0xf]
        %v658 = vld [vmem:[%s313 + $0x43c] sm:$0xf]
        %v659 = vld [vmem:[%s313 + $0x440] sm:$0xf]
        %v660 = vld [vmem:[%s313 + $0x444] sm:$0xf]
        %v661 = vld [vmem:[%s313 + $0x448] sm:$0xf]
        %v662 = vld [vmem:[%s313 + $0x44c] sm:$0xf]
        %v663 = vld [vmem:[%s313 + $0x450] sm:$0xf]
        %v664 = vld [vmem:[%s313 + $0x454] sm:$0xf]
        %v665 = vld [vmem:[%s313 + $0x458] sm:$0xf]
        %v666 = vld [vmem:[%s313 + $0x45c] sm:$0xf]
        %v667 = vld [vmem:[%s313 + $0x460] sm:$0xf]
        %v668 = vld [vmem:[%s313 + $0x464] sm:$0xf]
        %v669 = vld [vmem:[%s313 + $0x468] sm:$0xf]
        %v670 = vld [vmem:[%s313 + $0x46c] sm:$0xf]
        %v671 = vld [vmem:[%s313 + $0x470] sm:$0xf]
        %v672 = vld [vmem:[%s313 + $0x474] sm:$0xf]
        %v673 = vld [vmem:[%s313 + $0x478] sm:$0xf]
        %v674 = vld [vmem:[%s313 + $0x47c] sm:$0xf]
        %v675 = vld [vmem:[%s313 + $0x480] sm:$0xf]
        %v676 = vld [vmem:[%s313 + $0x484] sm:$0xf]
        %v677 = vld [vmem:[%s313 + $0x488] sm:$0xf]
        %v678 = vld [vmem:[%s313 + $0x48c] sm:$0xf]
        %v679 = vld [vmem:[%s313 + $0x490] sm:$0xf]
        %v680 = vld [vmem:[%s313 + $0x494] sm:$0xf]
        %v681 = vld [vmem:[%s313 + $0x498] sm:$0xf]
        %v682 = vld [vmem:[%s313 + $0x49c] sm:$0xf]
        %v683 = vld [vmem:[%s313 + $0x4a0] sm:$0xf]
        %v684 = vld [vmem:[%s313 + $0x4a4] sm:$0xf]
        %v685 = vld [vmem:[%s313 + $0x4a8] sm:$0xf]
        %v686 = vld [vmem:[%s313 + $0x4ac] sm:$0xf]
        %v687 = vld [vmem:[%s313 + $0x4b0] sm:$0xf]
        %v688 = vld [vmem:[%s313 + $0x4b4] sm:$0xf]
        %v689 = vld [vmem:[%s313 + $0x4b8] sm:$0xf]
        %v690 = vld [vmem:[%s313 + $0x4bc] sm:$0xf]
        %v691 = vld [vmem:[%s313 + $0x4c0] sm:$0xf]
        %v692 = vld [vmem:[%s313 + $0x4c4] sm:$0xf]
        %v693 = vld [vmem:[%s313 + $0x4c8] sm:$0xf]
        %v694 = vld [vmem:[%s313 + $0x4cc] sm:$0xf]
        %v695 = vld [vmem:[%s313 + $0x4d0] sm:$0xf]
        %v696 = vld [vmem:[%s313 + $0x4d4] sm:$0xf]
        %v697 = vld [vmem:[%s313 + $0x4d8] sm:$0xf]
        %v698 = vld [vmem:[%s313 + $0x4dc] sm:$0xf]
        %v699 = vld [vmem:[%s313 + $0x4e0] sm:$0xf]
        %v700 = vld [vmem:[%s313 + $0x4e4] sm:$0xf]
        %v701 = vld [vmem:[%s313 + $0x4e8] sm:$0xf]
        %v702 = vld [vmem:[%s313 + $0x4ec] sm:$0xf]
        %v703 = vld [vmem:[%s313 + $0x4f0] sm:$0xf]
        %v704 = vld [vmem:[%s313 + $0x4f4] sm:$0xf]
        %v705 = vld [vmem:[%s313 + $0x4f8] sm:$0xf]
        %v706 = vld [vmem:[%s313 + $0x4fc] sm:$0xf]
        %v707 = vld [vmem:[%s313 + $0x500] sm:$0xf]
        %v708 = vld [vmem:[%s313 + $0x504] sm:$0xf]
        %v709 = vld [vmem:[%s313 + $0x508] sm:$0xf]
        %v710 = vld [vmem:[%s313 + $0x50c] sm:$0xf]
        %v711 = vld [vmem:[%s313 + $0x510] sm:$0xf]
        %v712 = vld [vmem:[%s313 + $0x514] sm:$0xf]
        %v713 = vld [vmem:[%s313 + $0x518] sm:$0xf]
        %v714 = vld [vmem:[%s313 + $0x51c] sm:$0xf]
        %v715 = vld [vmem:[%s313 + $0x520] sm:$0xf]
        %v716 = vld [vmem:[%s313 + $0x524] sm:$0xf]
        %v717 = vld [vmem:[%s313 + $0x528] sm:$0xf]
        %v718 = vld [vmem:[%s313 + $0x52c] sm:$0xf]
        %v719 = vld [vmem:[%s313 + $0x530] sm:$0xf]
        %v720 = vld [vmem:[%s313 + $0x534] sm:$0xf]
        %v721 = vld [vmem:[%s313 + $0x538] sm:$0xf]
        %v722 = vld [vmem:[%s313 + $0x53c] sm:$0xf]
        %v723 = vld [vmem:[%s313 + $0x540] sm:$0xf]
        %v724 = vld [vmem:[%s313 + $0x544] sm:$0xf]
        %v725 = vld [vmem:[%s313 + $0x548] sm:$0xf]
        %v726 = vld [vmem:[%s313 + $0x54c] sm:$0xf]
        %v727 = vld [vmem:[%s313 + $0x550] sm:$0xf]
        %v728 = vld [vmem:[%s313 + $0x554] sm:$0xf]
        %v729 = vld [vmem:[%s313 + $0x558] sm:$0xf]
        %v730 = vld [vmem:[%s313 + $0x55c] sm:$0xf]
        %v731 = vld [vmem:[%s313 + $0x560] sm:$0xf]
        %v732 = vld [vmem:[%s313 + $0x564] sm:$0xf]
        %v733 = vld [vmem:[%s313 + $0x568] sm:$0xf]
        %v734 = vld [vmem:[%s313 + $0x56c] sm:$0xf]
        %v735 = vld [vmem:[%s313 + $0x570] sm:$0xf]
        %v736 = vld [vmem:[%s313 + $0x574] sm:$0xf]
        %v737 = vld [vmem:[%s313 + $0x578] sm:$0xf]
        %v738 = vld [vmem:[%s313 + $0x57c] sm:$0xf]
        %v739 = vld [vmem:[%s313 + $0x580] sm:$0xf]
        %v740 = vld [vmem:[%s313 + $0x584] sm:$0xf]
        %v741 = vld [vmem:[%s313 + $0x588] sm:$0xf]
        %v742 = vld [vmem:[%s313 + $0x58c] sm:$0xf]
        %v743 = vld [vmem:[%s313 + $0x590] sm:$0xf]
        %v744 = vld [vmem:[%s313 + $0x594] sm:$0xf]
        %v745 = vld [vmem:[%s313 + $0x598] sm:$0xf]
        %v746 = vld [vmem:[%s313 + $0x59c] sm:$0xf]
        %v747 = vld [vmem:[%s313 + $0x5a0] sm:$0xf]
        %v748 = vld [vmem:[%s313 + $0x5a4] sm:$0xf]
        %v749 = vld [vmem:[%s313 + $0x5a8] sm:$0xf]
        %v750 = vld [vmem:[%s313 + $0x5ac] sm:$0xf]
        %v751 = vld [vmem:[%s313 + $0x5b0] sm:$0xf]
        %v752 = vld [vmem:[%s313 + $0x5b4] sm:$0xf]
        %v753 = vld [vmem:[%s313 + $0x5b8] sm:$0xf]
        %v754 = vld [vmem:[%s313 + $0x5bc] sm:$0xf]
        %v755 = vld [vmem:[%s313 + $0x5c0] sm:$0xf]
        %v756 = vld [vmem:[%s313 + $0x5c4] sm:$0xf]
        %v757 = vld [vmem:[%s313 + $0x5c8] sm:$0xf]
        %v758 = vld [vmem:[%s313 + $0x5cc] sm:$0xf]
        %v759 = vld [vmem:[%s313 + $0x5d0] sm:$0xf]
        %v760 = vld [vmem:[%s313 + $0x5d4] sm:$0xf]
        %v761 = vld [vmem:[%s313 + $0x5d8] sm:$0xf]
        %v762 = vld [vmem:[%s313 + $0x5dc] sm:$0xf]
        %v763 = vld [vmem:[%s313 + $0x5e0] sm:$0xf]
        %v764 = vld [vmem:[%s313 + $0x5e4] sm:$0xf]
        %v765 = vld [vmem:[%s313 + $0x5e8] sm:$0xf]
        %v766 = vld [vmem:[%s313 + $0x5ec] sm:$0xf]
        %v767 = vld [vmem:[%s313 + $0x5f0] sm:$0xf]
        %v768 = vld [vmem:[%s313 + $0x5f4] sm:$0xf]
        %v769 = vld [vmem:[%s313 + $0x5f8] sm:$0xf]
        %v770 = vld [vmem:[%s313 + $0x5fc] sm:$0xf]
        %v771 = vld [vmem:[%s321] sm:$0x1]
        %v773 = vlaneseq
        %v774 = vshrl.u32 %v773, 7
        %v775 = vsub.s32 0, %v774
        %v776 = vrot.slane %v771, %v775
        %v781 = vcombine.high %v384, %v384
        %v783 = vunpack.c.l.s4 1966171168
        %v784 = vunpack.c.0.s8 %v783
        %v785 = vlaneseq
        %v786 = vshrl.u32 %v785, 7
        %v787 = vsub.s32 %v784, %v786
        %v788 = vrot.slane %v384, %v787
        %v790 = vunpack.c.l.s4 1966171168
        %v791 = vunpack.c.0.s8 %v790
        %v792 = vlaneseq
        %v793 = vshrl.u32 %v792, 7
        %v794 = vsub.s32 %v791, %v793
        %v795 = vrot.slane %v781, %v794
        %v796 = vcombine.high %v788, %v788
        %v797 = vcombine.high %v795, %v795
        %v799 = vunpack.c.l.s4 1966171168
        %v800 = vunpack.c.0.s8 %v799
        %v801 = vlaneseq
        %v802 = vshrl.u32 %v801, 7
        %v803 = vsub.s32 %v800, %v802
        %v804 = vrot.slane %v788, %v803
        %v806 = vunpack.c.l.s4 1966171168
        %v807 = vunpack.c.0.s8 %v806
        %v808 = vlaneseq
        %v809 = vshrl.u32 %v808, 7
        %v810 = vsub.s32 %v807, %v809
        %v811 = vrot.slane %v795, %v810
        %v813 = vunpack.c.l.s4 1966171168
        %v814 = vunpack.c.0.s8 %v813
        %v815 = vlaneseq
        %v816 = vshrl.u32 %v815, 7
        %v817 = vsub.s32 %v814, %v816
        %v818 = vrot.slane %v796, %v817
        %v820 = vunpack.c.l.s4 1966171168
        %v821 = vunpack.c.0.s8 %v820
        %v822 = vlaneseq
        %v823 = vshrl.u32 %v822, 7
        %v824 = vsub.s32 %v821, %v823
        %v825 = vrot.slane %v797, %v824
        %v826 = vcombine.high %v804, %v804
        %v827 = vcombine.high %v811, %v811
        %v828 = vcombine.high %v818, %v818
        %v829 = vcombine.high %v825, %v825
        %v830 = vcombine.high %v385, %v385
        %v832 = vunpack.c.l.s4 1966171168
        %v833 = vunpack.c.0.s8 %v832
        %v834 = vlaneseq
        %v835 = vshrl.u32 %v834, 7
        %v836 = vsub.s32 %v833, %v835
        %v837 = vrot.slane %v385, %v836
        %v839 = vunpack.c.l.s4 1966171168
        %v840 = vunpack.c.0.s8 %v839
        %v841 = vlaneseq
        %v842 = vshrl.u32 %v841, 7
        %v843 = vsub.s32 %v840, %v842
        %v844 = vrot.slane %v830, %v843
        %v845 = vcombine.high %v837, %v837
        %v846 = vcombine.high %v844, %v844
        %v848 = vunpack.c.l.s4 1966171168
        %v849 = vunpack.c.0.s8 %v848
        %v850 = vlaneseq
        %v851 = vshrl.u32 %v850, 7
        %v852 = vsub.s32 %v849, %v851
        %v853 = vrot.slane %v837, %v852
        %v855 = vunpack.c.l.s4 1966171168
        %v856 = vunpack.c.0.s8 %v855
        %v857 = vlaneseq
        %v858 = vshrl.u32 %v857, 7
        %v859 = vsub.s32 %v856, %v858
        %v860 = vrot.slane %v844, %v859
        %v862 = vunpack.c.l.s4 1966171168
        %v863 = vunpack.c.0.s8 %v862
        %v864 = vlaneseq
        %v865 = vshrl.u32 %v864, 7
        %v866 = vsub.s32 %v863, %v865
        %v867 = vrot.slane %v845, %v866
        %v869 = vunpack.c.l.s4 1966171168
        %v870 = vunpack.c.0.s8 %v869
        %v871 = vlaneseq
        %v872 = vshrl.u32 %v871, 7
        %v873 = vsub.s32 %v870, %v872
        %v874 = vrot.slane %v846, %v873
        %v875 = vcombine.high %v853, %v853
        %v876 = vcombine.high %v860, %v860
        %v877 = vcombine.high %v867, %v867
        %v878 = vcombine.high %v874, %v874
        %v879 = vcombine.high %v386, %v386
        %v881 = vunpack.c.l.s4 1966171168
        %v882 = vunpack.c.0.s8 %v881
        %v883 = vlaneseq
        %v884 = vshrl.u32 %v883, 7
        %v885 = vsub.s32 %v882, %v884
        %v886 = vrot.slane %v386, %v885
        %v888 = vunpack.c.l.s4 1966171168
        %v889 = vunpack.c.0.s8 %v888
        %v890 = vlaneseq
        %v891 = vshrl.u32 %v890, 7
        %v892 = vsub.s32 %v889, %v891
        %v893 = vrot.slane %v879, %v892
        %v894 = vcombine.high %v886, %v886
        %v895 = vcombine.high %v893, %v893
        %v897 = vunpack.c.l.s4 1966171168
        %v898 = vunpack.c.0.s8 %v897
        %v899 = vlaneseq
        %v900 = vshrl.u32 %v899, 7
        %v901 = vsub.s32 %v898, %v900
        %v902 = vrot.slane %v886, %v901
        %v904 = vunpack.c.l.s4 1966171168
        %v905 = vunpack.c.0.s8 %v904
        %v906 = vlaneseq
        %v907 = vshrl.u32 %v906, 7
        %v908 = vsub.s32 %v905, %v907
        %v909 = vrot.slane %v893, %v908
        %v911 = vunpack.c.l.s4 1966171168
        %v912 = vunpack.c.0.s8 %v911
        %v913 = vlaneseq
        %v914 = vshrl.u32 %v913, 7
        %v915 = vsub.s32 %v912, %v914
        %v916 = vrot.slane %v894, %v915
        %v918 = vunpack.c.l.s4 1966171168
        %v919 = vunpack.c.0.s8 %v918
        %v920 = vlaneseq
        %v921 = vshrl.u32 %v920, 7
        %v922 = vsub.s32 %v919, %v921
        %v923 = vrot.slane %v895, %v922
        %v924 = vcombine.high %v902, %v902
        %v925 = vcombine.high %v909, %v909
        %v926 = vcombine.high %v916, %v916
        %v927 = vcombine.high %v923, %v923
        %v1336 = vunpack.c.l.b16 %v387
        %v1337 = vunpack.c.l.b16 %v388
        %v1338 = vunpack.c.l.b16 %v389
        %v1339 = vunpack.c.l.b16 %v390
        %v1340 = vunpack.c.l.b16 %v391
        %v1341 = vunpack.c.l.b16 %v392
        %v1342 = vunpack.c.l.b16 %v393
        %v1343 = vunpack.c.l.b16 %v394
        %v1344 = vunpack.c.l.b16 %v395
        %v1345 = vunpack.c.l.b16 %v396
        %v1346 = vunpack.c.l.b16 %v397
        %v1347 = vunpack.c.l.b16 %v398
        %v1348 = vunpack.c.l.b16 %v399
        %v1349 = vunpack.c.l.b16 %v400
        %v1350 = vunpack.c.l.b16 %v401
        %v1351 = vunpack.c.l.b16 %v402
        %v1352 = vunpack.c.l.b16 %v403
        %v1353 = vunpack.c.l.b16 %v404
        %v1354 = vunpack.c.l.b16 %v405
        %v1355 = vunpack.c.l.b16 %v406
        %v1356 = vunpack.c.l.b16 %v407
        %v1357 = vunpack.c.l.b16 %v408
        %v1358 = vunpack.c.l.b16 %v409
        %v1359 = vunpack.c.l.b16 %v410
        %v1360 = vunpack.c.l.b16 %v411
        %v1361 = vunpack.c.l.b16 %v412
        %v1362 = vunpack.c.l.b16 %v413
        %v1363 = vunpack.c.l.b16 %v414
        %v1364 = vunpack.c.l.b16 %v415
        %v1365 = vunpack.c.l.b16 %v416
        %v1366 = vunpack.c.l.b16 %v417
        %v1367 = vunpack.c.l.b16 %v418
        %v1368 = vunpack.c.l.b16 %v419
        %v1369 = vunpack.c.l.b16 %v420
        %v1370 = vunpack.c.l.b16 %v421
        %v1371 = vunpack.c.l.b16 %v422
        %v1372 = vunpack.c.l.b16 %v423
        %v1373 = vunpack.c.l.b16 %v424
        %v1374 = vunpack.c.l.b16 %v425
        %v1375 = vunpack.c.l.b16 %v426
        %v1376 = vunpack.c.l.b16 %v427
        %v1377 = vunpack.c.l.b16 %v428
        %v1378 = vunpack.c.l.b16 %v429
        %v1379 = vunpack.c.l.b16 %v430
        %v1380 = vunpack.c.l.b16 %v431
        %v1381 = vunpack.c.l.b16 %v432
        %v1382 = vunpack.c.l.b16 %v433
        %v1383 = vunpack.c.l.b16 %v434
        %v1384 = vunpack.c.l.b16 %v435
        %v1385 = vunpack.c.l.b16 %v436
        %v1386 = vunpack.c.l.b16 %v437
        %v1387 = vunpack.c.l.b16 %v438
        %v1388 = vunpack.c.l.b16 %v439
        %v1389 = vunpack.c.l.b16 %v440
        %v1390 = vunpack.c.l.b16 %v441
        %v1391 = vunpack.c.l.b16 %v442
        %v1392 = vunpack.c.l.b16 %v443
        %v1393 = vunpack.c.l.b16 %v444
        %v1394 = vunpack.c.l.b16 %v445
        %v1395 = vunpack.c.l.b16 %v446
        %v1396 = vunpack.c.l.b16 %v447
        %v1397 = vunpack.c.l.b16 %v448
        %v1398 = vunpack.c.l.b16 %v449
        %v1399 = vunpack.c.l.b16 %v450
        %v1400 = vunpack.c.l.b16 %v451
        %v1401 = vunpack.c.l.b16 %v452
        %v1402 = vunpack.c.l.b16 %v453
        %v1403 = vunpack.c.l.b16 %v454
        %v1404 = vunpack.c.l.b16 %v455
        %v1405 = vunpack.c.l.b16 %v456
        %v1406 = vunpack.c.l.b16 %v457
        %v1407 = vunpack.c.l.b16 %v458
        %v1408 = vunpack.c.l.b16 %v459
        %v1409 = vunpack.c.l.b16 %v460
        %v1410 = vunpack.c.l.b16 %v461
        %v1411 = vunpack.c.l.b16 %v462
        %v1412 = vunpack.c.l.b16 %v463
        %v1413 = vunpack.c.l.b16 %v464
        %v1414 = vunpack.c.l.b16 %v465
        %v1415 = vunpack.c.l.b16 %v466
        %v1416 = vunpack.c.l.b16 %v467
        %v1417 = vunpack.c.l.b16 %v468
        %v1418 = vunpack.c.l.b16 %v469
        %v1419 = vunpack.c.l.b16 %v470
        %v1420 = vunpack.c.l.b16 %v471
        %v1421 = vunpack.c.l.b16 %v472
        %v1422 = vunpack.c.l.b16 %v473
        %v1423 = vunpack.c.l.b16 %v474
        %v1424 = vunpack.c.l.b16 %v475
        %v1425 = vunpack.c.l.b16 %v476
        %v1426 = vunpack.c.l.b16 %v477
        %v1427 = vunpack.c.l.b16 %v478
        %v1428 = vunpack.c.l.b16 %v479
        %v1429 = vunpack.c.l.b16 %v480
        %v1430 = vunpack.c.l.b16 %v481
        %v1431 = vunpack.c.l.b16 %v482
        %v1432 = vunpack.c.l.b16 %v483
        %v1433 = vunpack.c.l.b16 %v484
        %v1434 = vunpack.c.l.b16 %v485
        %v1435 = vunpack.c.l.b16 %v486
        %v1436 = vunpack.c.l.b16 %v487
        %v1437 = vunpack.c.l.b16 %v488
        %v1438 = vunpack.c.l.b16 %v489
        %v1439 = vunpack.c.l.b16 %v490
        %v1440 = vunpack.c.l.b16 %v491
        %v1441 = vunpack.c.l.b16 %v492
        %v1442 = vunpack.c.l.b16 %v493
        %v1443 = vunpack.c.l.b16 %v494
        %v1444 = vunpack.c.l.b16 %v495
        %v1445 = vunpack.c.l.b16 %v496
        %v1446 = vunpack.c.l.b16 %v497
        %v1447 = vunpack.c.l.b16 %v498
        %v1448 = vunpack.c.l.b16 %v499
        %v1449 = vunpack.c.l.b16 %v500
        %v1450 = vunpack.c.l.b16 %v501
        %v1451 = vunpack.c.l.b16 %v502
        %v1452 = vunpack.c.l.b16 %v503
        %v1453 = vunpack.c.l.b16 %v504
        %v1454 = vunpack.c.l.b16 %v505
        %v1455 = vunpack.c.l.b16 %v506
        %v1456 = vunpack.c.l.b16 %v507
        %v1457 = vunpack.c.l.b16 %v508
        %v1458 = vunpack.c.l.b16 %v509
        %v1459 = vunpack.c.l.b16 %v510
        %v1460 = vunpack.c.l.b16 %v511
        %v1461 = vunpack.c.l.b16 %v512
        %v1462 = vunpack.c.l.b16 %v513
        %v1463 = vunpack.c.l.b16 %v514
        %v1464 = vunpack.c.l.b16 %v515
        %v1465 = vunpack.c.l.b16 %v516
        %v1466 = vunpack.c.l.b16 %v517
        %v1467 = vunpack.c.l.b16 %v518
        %v1468 = vunpack.c.l.b16 %v519
        %v1469 = vunpack.c.l.b16 %v520
        %v1470 = vunpack.c.l.b16 %v521
        %v1471 = vunpack.c.l.b16 %v522
        %v1472 = vunpack.c.l.b16 %v523
        %v1473 = vunpack.c.l.b16 %v524
        %v1474 = vunpack.c.l.b16 %v525
        %v1475 = vunpack.c.l.b16 %v526
        %v1476 = vunpack.c.l.b16 %v527
        %v1477 = vunpack.c.l.b16 %v528
        %v1478 = vunpack.c.l.b16 %v529
        %v1479 = vunpack.c.l.b16 %v530
        %v1480 = vunpack.c.l.b16 %v531
        %v1481 = vunpack.c.l.b16 %v532
        %v1482 = vunpack.c.l.b16 %v533
        %v1483 = vunpack.c.l.b16 %v534
        %v1484 = vunpack.c.l.b16 %v535
        %v1485 = vunpack.c.l.b16 %v536
        %v1486 = vunpack.c.l.b16 %v537
        %v1487 = vunpack.c.l.b16 %v538
        %v1488 = vunpack.c.l.b16 %v539
        %v1489 = vunpack.c.l.b16 %v540
        %v1490 = vunpack.c.l.b16 %v541
        %v1491 = vunpack.c.l.b16 %v542
        %v1492 = vunpack.c.l.b16 %v543
        %v1493 = vunpack.c.l.b16 %v544
        %v1494 = vunpack.c.l.b16 %v545
        %v1495 = vunpack.c.l.b16 %v546
        %v1496 = vunpack.c.l.b16 %v547
        %v1497 = vunpack.c.l.b16 %v548
        %v1498 = vunpack.c.l.b16 %v549
        %v1499 = vunpack.c.l.b16 %v550
        %v1500 = vunpack.c.l.b16 %v551
        %v1501 = vunpack.c.l.b16 %v552
        %v1502 = vunpack.c.l.b16 %v553
        %v1503 = vunpack.c.l.b16 %v554
        %v1504 = vunpack.c.l.b16 %v555
        %v1505 = vunpack.c.l.b16 %v556
        %v1506 = vunpack.c.l.b16 %v557
        %v1507 = vunpack.c.l.b16 %v558
        %v1508 = vunpack.c.l.b16 %v559
        %v1509 = vunpack.c.l.b16 %v560
        %v1510 = vunpack.c.l.b16 %v561
        %v1511 = vunpack.c.l.b16 %v562
        %v1512 = vunpack.c.l.b16 %v563
        %v1513 = vunpack.c.l.b16 %v564
        %v1514 = vunpack.c.l.b16 %v565
        %v1515 = vunpack.c.l.b16 %v566
        %v1516 = vunpack.c.l.b16 %v567
        %v1517 = vunpack.c.l.b16 %v568
        %v1518 = vunpack.c.l.b16 %v569
        %v1519 = vunpack.c.l.b16 %v570
        %v1520 = vunpack.c.l.b16 %v571
        %v1521 = vunpack.c.l.b16 %v572
        %v1522 = vunpack.c.l.b16 %v573
        %v1523 = vunpack.c.l.b16 %v574
        %v1524 = vunpack.c.l.b16 %v575
        %v1525 = vunpack.c.l.b16 %v576
        %v1526 = vunpack.c.l.b16 %v577
        %v1527 = vunpack.c.l.b16 %v578
        %v1528 = vunpack.c.l.b16 %v579
        %v1529 = vunpack.c.l.b16 %v580
        %v1530 = vunpack.c.l.b16 %v581
        %v1531 = vunpack.c.l.b16 %v582
        %v1532 = vunpack.c.l.b16 %v583
        %v1533 = vunpack.c.l.b16 %v584
        %v1534 = vunpack.c.l.b16 %v585
        %v1535 = vunpack.c.l.b16 %v586
        %v1536 = vunpack.c.l.b16 %v587
        %v1537 = vunpack.c.l.b16 %v588
        %v1538 = vunpack.c.l.b16 %v589
        %v1539 = vunpack.c.l.b16 %v590
        %v1540 = vunpack.c.l.b16 %v591
        %v1541 = vunpack.c.l.b16 %v592
        %v1542 = vunpack.c.l.b16 %v593
        %v1543 = vunpack.c.l.b16 %v594
        %v1544 = vunpack.c.l.b16 %v595
        %v1545 = vunpack.c.l.b16 %v596
        %v1546 = vunpack.c.l.b16 %v597
        %v1547 = vunpack.c.l.b16 %v598
        %v1548 = vunpack.c.l.b16 %v599
        %v1549 = vunpack.c.l.b16 %v600
        %v1550 = vunpack.c.l.b16 %v601
        %v1551 = vunpack.c.l.b16 %v602
        %v1552 = vunpack.c.l.b16 %v603
        %v1553 = vunpack.c.l.b16 %v604
        %v1554 = vunpack.c.l.b16 %v605
        %v1555 = vunpack.c.l.b16 %v606
        %v1556 = vunpack.c.l.b16 %v607
        %v1557 = vunpack.c.l.b16 %v608
        %v1558 = vunpack.c.l.b16 %v609
        %v1559 = vunpack.c.l.b16 %v610
        %v1560 = vunpack.c.l.b16 %v611
        %v1561 = vunpack.c.l.b16 %v612
        %v1562 = vunpack.c.l.b16 %v613
        %v1563 = vunpack.c.l.b16 %v614
        %v1564 = vunpack.c.l.b16 %v615
        %v1565 = vunpack.c.l.b16 %v616
        %v1566 = vunpack.c.l.b16 %v617
        %v1567 = vunpack.c.l.b16 %v618
        %v1568 = vunpack.c.l.b16 %v619
        %v1569 = vunpack.c.l.b16 %v620
        %v1570 = vunpack.c.l.b16 %v621
        %v1571 = vunpack.c.l.b16 %v622
        %v1572 = vunpack.c.l.b16 %v623
        %v1573 = vunpack.c.l.b16 %v624
        %v1574 = vunpack.c.l.b16 %v625
        %v1575 = vunpack.c.l.b16 %v626
        %v1576 = vunpack.c.l.b16 %v627
        %v1577 = vunpack.c.l.b16 %v628
        %v1578 = vunpack.c.l.b16 %v629
        %v1579 = vunpack.c.l.b16 %v630
        %v1580 = vunpack.c.l.b16 %v631
        %v1581 = vunpack.c.l.b16 %v632
        %v1582 = vunpack.c.l.b16 %v633
        %v1583 = vunpack.c.l.b16 %v634
        %v1584 = vunpack.c.l.b16 %v635
        %v1585 = vunpack.c.l.b16 %v636
        %v1586 = vunpack.c.l.b16 %v637
        %v1587 = vunpack.c.l.b16 %v638
        %v1588 = vunpack.c.l.b16 %v639
        %v1589 = vunpack.c.l.b16 %v640
        %v1590 = vunpack.c.l.b16 %v641
        %v1591 = vunpack.c.l.b16 %v642
        %v1592 = vunpack.c.l.b16 %v643
        %v1593 = vunpack.c.l.b16 %v644
        %v1594 = vunpack.c.l.b16 %v645
        %v1595 = vunpack.c.l.b16 %v646
        %v1596 = vunpack.c.l.b16 %v647
        %v1597 = vunpack.c.l.b16 %v648
        %v1598 = vunpack.c.l.b16 %v649
        %v1599 = vunpack.c.l.b16 %v650
        %v1600 = vunpack.c.l.b16 %v651
        %v1601 = vunpack.c.l.b16 %v652
        %v1602 = vunpack.c.l.b16 %v653
        %v1603 = vunpack.c.l.b16 %v654
        %v1604 = vunpack.c.l.b16 %v655
        %v1605 = vunpack.c.l.b16 %v656
        %v1606 = vunpack.c.l.b16 %v657
        %v1607 = vunpack.c.l.b16 %v658
        %v1608 = vunpack.c.l.b16 %v659
        %v1609 = vunpack.c.l.b16 %v660
        %v1610 = vunpack.c.l.b16 %v661
        %v1611 = vunpack.c.l.b16 %v662
        %v1612 = vunpack.c.l.b16 %v663
        %v1613 = vunpack.c.l.b16 %v664
        %v1614 = vunpack.c.l.b16 %v665
        %v1615 = vunpack.c.l.b16 %v666
        %v1616 = vunpack.c.l.b16 %v667
        %v1617 = vunpack.c.l.b16 %v668
        %v1618 = vunpack.c.l.b16 %v669
        %v1619 = vunpack.c.l.b16 %v670
        %v1620 = vunpack.c.l.b16 %v671
        %v1621 = vunpack.c.l.b16 %v672
        %v1622 = vunpack.c.l.b16 %v673
        %v1623 = vunpack.c.l.b16 %v674
        %v1624 = vunpack.c.l.b16 %v675
        %v1625 = vunpack.c.l.b16 %v676
        %v1626 = vunpack.c.l.b16 %v677
        %v1627 = vunpack.c.l.b16 %v678
        %v1628 = vunpack.c.l.b16 %v679
        %v1629 = vunpack.c.l.b16 %v680
        %v1630 = vunpack.c.l.b16 %v681
        %v1631 = vunpack.c.l.b16 %v682
        %v1632 = vunpack.c.l.b16 %v683
        %v1633 = vunpack.c.l.b16 %v684
        %v1634 = vunpack.c.l.b16 %v685
        %v1635 = vunpack.c.l.b16 %v686
        %v1636 = vunpack.c.l.b16 %v687
        %v1637 = vunpack.c.l.b16 %v688
        %v1638 = vunpack.c.l.b16 %v689
        %v1639 = vunpack.c.l.b16 %v690
        %v1640 = vunpack.c.l.b16 %v691
        %v1641 = vunpack.c.l.b16 %v692
        %v1642 = vunpack.c.l.b16 %v693
        %v1643 = vunpack.c.l.b16 %v694
        %v1644 = vunpack.c.l.b16 %v695
        %v1645 = vunpack.c.l.b16 %v696
        %v1646 = vunpack.c.l.b16 %v697
        %v1647 = vunpack.c.l.b16 %v698
        %v1648 = vunpack.c.l.b16 %v699
        %v1649 = vunpack.c.l.b16 %v700
        %v1650 = vunpack.c.l.b16 %v701
        %v1651 = vunpack.c.l.b16 %v702
        %v1652 = vunpack.c.l.b16 %v703
        %v1653 = vunpack.c.l.b16 %v704
        %v1654 = vunpack.c.l.b16 %v705
        %v1655 = vunpack.c.l.b16 %v706
        %v1656 = vunpack.c.l.b16 %v707
        %v1657 = vunpack.c.l.b16 %v708
        %v1658 = vunpack.c.l.b16 %v709
        %v1659 = vunpack.c.l.b16 %v710
        %v1660 = vunpack.c.l.b16 %v711
        %v1661 = vunpack.c.l.b16 %v712
        %v1662 = vunpack.c.l.b16 %v713
        %v1663 = vunpack.c.l.b16 %v714
        %v1664 = vunpack.c.l.b16 %v715
        %v1665 = vunpack.c.l.b16 %v716
        %v1666 = vunpack.c.l.b16 %v717
        %v1667 = vunpack.c.l.b16 %v718
        %v1668 = vunpack.c.l.b16 %v719
        %v1669 = vunpack.c.l.b16 %v720
        %v1670 = vunpack.c.l.b16 %v721
        %v1671 = vunpack.c.l.b16 %v722
        %v1672 = vunpack.c.l.b16 %v723
        %v1673 = vunpack.c.l.b16 %v724
        %v1674 = vunpack.c.l.b16 %v725
        %v1675 = vunpack.c.l.b16 %v726
        %v1676 = vunpack.c.l.b16 %v727
        %v1677 = vunpack.c.l.b16 %v728
        %v1678 = vunpack.c.l.b16 %v729
        %v1679 = vunpack.c.l.b16 %v730
        %v1680 = vunpack.c.l.b16 %v731
        %v1681 = vunpack.c.l.b16 %v732
        %v1682 = vunpack.c.l.b16 %v733
        %v1683 = vunpack.c.l.b16 %v734
        %v1684 = vunpack.c.l.b16 %v735
        %v1685 = vunpack.c.l.b16 %v736
        %v1686 = vunpack.c.l.b16 %v737
        %v1687 = vunpack.c.l.b16 %v738
        %v1688 = vunpack.c.l.b16 %v739
        %v1689 = vunpack.c.l.b16 %v740
        %v1690 = vunpack.c.l.b16 %v741
        %v1691 = vunpack.c.l.b16 %v742
        %v1692 = vunpack.c.l.b16 %v743
        %v1693 = vunpack.c.l.b16 %v744
        %v1694 = vunpack.c.l.b16 %v745
        %v1695 = vunpack.c.l.b16 %v746
        %v1696 = vunpack.c.l.b16 %v747
        %v1697 = vunpack.c.l.b16 %v748
        %v1698 = vunpack.c.l.b16 %v749
        %v1699 = vunpack.c.l.b16 %v750
        %v1700 = vunpack.c.l.b16 %v751
        %v1701 = vunpack.c.l.b16 %v752
        %v1702 = vunpack.c.l.b16 %v753
        %v1703 = vunpack.c.l.b16 %v754
        %v1704 = vunpack.c.l.b16 %v755
        %v1705 = vunpack.c.l.b16 %v756
        %v1706 = vunpack.c.l.b16 %v757
        %v1707 = vunpack.c.l.b16 %v758
        %v1708 = vunpack.c.l.b16 %v759
        %v1709 = vunpack.c.l.b16 %v760
        %v1710 = vunpack.c.l.b16 %v761
        %v1711 = vunpack.c.l.b16 %v762
        %v1712 = vunpack.c.l.b16 %v763
        %v1713 = vunpack.c.l.b16 %v764
        %v1714 = vunpack.c.l.b16 %v765
        %v1715 = vunpack.c.l.b16 %v766
        %v1716 = vunpack.c.l.b16 %v767
        %v1717 = vunpack.c.l.b16 %v768
        %v1718 = vunpack.c.l.b16 %v769
        %v1719 = vunpack.c.l.b16 %v770
        %v1720 = vpack.c.b16 %v1337, %v1336
        %v1721 = vpack.c.b16 %v1339, %v1338
        %v1722 = vpack.c.b16 %v1341, %v1340
        %v1723 = vpack.c.b16 %v1343, %v1342
        %v1724 = vpack.c.b16 %v1345, %v1344
        %v1725 = vpack.c.b16 %v1347, %v1346
        %v1726 = vpack.c.b16 %v1349, %v1348
        %v1727 = vpack.c.b16 %v1351, %v1350
        %v1728 = vpack.c.b16 %v1353, %v1352
        %v1729 = vpack.c.b16 %v1355, %v1354
        %v1730 = vpack.c.b16 %v1357, %v1356
        %v1731 = vpack.c.b16 %v1359, %v1358
        %v1732 = vpack.c.b16 %v1361, %v1360
        %v1733 = vpack.c.b16 %v1363, %v1362
        %v1734 = vpack.c.b16 %v1365, %v1364
        %v1735 = vpack.c.b16 %v1367, %v1366
        %v1736 = vpack.c.b16 %v1369, %v1368
        %v1737 = vpack.c.b16 %v1371, %v1370
        %v1738 = vpack.c.b16 %v1373, %v1372
        %v1739 = vpack.c.b16 %v1375, %v1374
        %v1740 = vpack.c.b16 %v1377, %v1376
        %v1741 = vpack.c.b16 %v1379, %v1378
        %v1742 = vpack.c.b16 %v1381, %v1380
        %v1743 = vpack.c.b16 %v1383, %v1382
        %v1744 = vpack.c.b16 %v1385, %v1384
        %v1745 = vpack.c.b16 %v1387, %v1386
        %v1746 = vpack.c.b16 %v1389, %v1388
        %v1747 = vpack.c.b16 %v1391, %v1390
        %v1748 = vpack.c.b16 %v1393, %v1392
        %v1749 = vpack.c.b16 %v1395, %v1394
        %v1750 = vpack.c.b16 %v1397, %v1396
        %v1751 = vpack.c.b16 %v1399, %v1398
        %v1752 = vpack.c.b16 %v1401, %v1400
        %v1753 = vpack.c.b16 %v1403, %v1402
        %v1754 = vpack.c.b16 %v1405, %v1404
        %v1755 = vpack.c.b16 %v1407, %v1406
        %v1756 = vpack.c.b16 %v1409, %v1408
        %v1757 = vpack.c.b16 %v1411, %v1410
        %v1758 = vpack.c.b16 %v1413, %v1412
        %v1759 = vpack.c.b16 %v1415, %v1414
        %v1760 = vpack.c.b16 %v1417, %v1416
        %v1761 = vpack.c.b16 %v1419, %v1418
        %v1762 = vpack.c.b16 %v1421, %v1420
        %v1763 = vpack.c.b16 %v1423, %v1422
        %v1764 = vpack.c.b16 %v1425, %v1424
        %v1765 = vpack.c.b16 %v1427, %v1426
        %v1766 = vpack.c.b16 %v1429, %v1428
        %v1767 = vpack.c.b16 %v1431, %v1430
        %v1768 = vpack.c.b16 %v1433, %v1432
        %v1769 = vpack.c.b16 %v1435, %v1434
        %v1770 = vpack.c.b16 %v1437, %v1436
        %v1771 = vpack.c.b16 %v1439, %v1438
        %v1772 = vpack.c.b16 %v1441, %v1440
        %v1773 = vpack.c.b16 %v1443, %v1442
        %v1774 = vpack.c.b16 %v1445, %v1444
        %v1775 = vpack.c.b16 %v1447, %v1446
        %v1776 = vpack.c.b16 %v1449, %v1448
        %v1777 = vpack.c.b16 %v1451, %v1450
        %v1778 = vpack.c.b16 %v1453, %v1452
        %v1779 = vpack.c.b16 %v1455, %v1454
        %v1780 = vpack.c.b16 %v1457, %v1456
        %v1781 = vpack.c.b16 %v1459, %v1458
        %v1782 = vpack.c.b16 %v1461, %v1460
        %v1783 = vpack.c.b16 %v1463, %v1462
        %v1784 = vpack.c.b16 %v1465, %v1464
        %v1785 = vpack.c.b16 %v1467, %v1466
        %v1786 = vpack.c.b16 %v1469, %v1468
        %v1787 = vpack.c.b16 %v1471, %v1470
        %v1788 = vpack.c.b16 %v1473, %v1472
        %v1789 = vpack.c.b16 %v1475, %v1474
        %v1790 = vpack.c.b16 %v1477, %v1476
        %v1791 = vpack.c.b16 %v1479, %v1478
        %v1792 = vpack.c.b16 %v1481, %v1480
        %v1793 = vpack.c.b16 %v1483, %v1482
        %v1794 = vpack.c.b16 %v1485, %v1484
        %v1795 = vpack.c.b16 %v1487, %v1486
        %v1796 = vpack.c.b16 %v1489, %v1488
        %v1797 = vpack.c.b16 %v1491, %v1490
        %v1798 = vpack.c.b16 %v1493, %v1492
        %v1799 = vpack.c.b16 %v1495, %v1494
        %v1800 = vpack.c.b16 %v1497, %v1496
        %v1801 = vpack.c.b16 %v1499, %v1498
        %v1802 = vpack.c.b16 %v1501, %v1500
        %v1803 = vpack.c.b16 %v1503, %v1502
        %v1804 = vpack.c.b16 %v1505, %v1504
        %v1805 = vpack.c.b16 %v1507, %v1506
        %v1806 = vpack.c.b16 %v1509, %v1508
        %v1807 = vpack.c.b16 %v1511, %v1510
        %v1808 = vpack.c.b16 %v1513, %v1512
        %v1809 = vpack.c.b16 %v1515, %v1514
        %v1810 = vpack.c.b16 %v1517, %v1516
        %v1811 = vpack.c.b16 %v1519, %v1518
        %v1812 = vpack.c.b16 %v1521, %v1520
        %v1813 = vpack.c.b16 %v1523, %v1522
        %v1814 = vpack.c.b16 %v1525, %v1524
        %v1815 = vpack.c.b16 %v1527, %v1526
        %v1816 = vpack.c.b16 %v1529, %v1528
        %v1817 = vpack.c.b16 %v1531, %v1530
        %v1818 = vpack.c.b16 %v1533, %v1532
        %v1819 = vpack.c.b16 %v1535, %v1534
        %v1820 = vpack.c.b16 %v1537, %v1536
        %v1821 = vpack.c.b16 %v1539, %v1538
        %v1822 = vpack.c.b16 %v1541, %v1540
        %v1823 = vpack.c.b16 %v1543, %v1542
        %v1824 = vpack.c.b16 %v1545, %v1544
        %v1825 = vpack.c.b16 %v1547, %v1546
        %v1826 = vpack.c.b16 %v1549, %v1548
        %v1827 = vpack.c.b16 %v1551, %v1550
        %v1828 = vpack.c.b16 %v1553, %v1552
        %v1829 = vpack.c.b16 %v1555, %v1554
        %v1830 = vpack.c.b16 %v1557, %v1556
        %v1831 = vpack.c.b16 %v1559, %v1558
        %v1832 = vpack.c.b16 %v1561, %v1560
        %v1833 = vpack.c.b16 %v1563, %v1562
        %v1834 = vpack.c.b16 %v1565, %v1564
        %v1835 = vpack.c.b16 %v1567, %v1566
        %v1836 = vpack.c.b16 %v1569, %v1568
        %v1837 = vpack.c.b16 %v1571, %v1570
        %v1838 = vpack.c.b16 %v1573, %v1572
        %v1839 = vpack.c.b16 %v1575, %v1574
        %v1840 = vpack.c.b16 %v1577, %v1576
        %v1841 = vpack.c.b16 %v1579, %v1578
        %v1842 = vpack.c.b16 %v1581, %v1580
        %v1843 = vpack.c.b16 %v1583, %v1582
        %v1844 = vpack.c.b16 %v1585, %v1584
        %v1845 = vpack.c.b16 %v1587, %v1586
        %v1846 = vpack.c.b16 %v1589, %v1588
        %v1847 = vpack.c.b16 %v1591, %v1590
        %v1848 = vpack.c.b16 %v1593, %v1592
        %v1849 = vpack.c.b16 %v1595, %v1594
        %v1850 = vpack.c.b16 %v1597, %v1596
        %v1851 = vpack.c.b16 %v1599, %v1598
        %v1852 = vpack.c.b16 %v1601, %v1600
        %v1853 = vpack.c.b16 %v1603, %v1602
        %v1854 = vpack.c.b16 %v1605, %v1604
        %v1855 = vpack.c.b16 %v1607, %v1606
        %v1856 = vpack.c.b16 %v1609, %v1608
        %v1857 = vpack.c.b16 %v1611, %v1610
        %v1858 = vpack.c.b16 %v1613, %v1612
        %v1859 = vpack.c.b16 %v1615, %v1614
        %v1860 = vpack.c.b16 %v1617, %v1616
        %v1861 = vpack.c.b16 %v1619, %v1618
        %v1862 = vpack.c.b16 %v1621, %v1620
        %v1863 = vpack.c.b16 %v1623, %v1622
        %v1864 = vpack.c.b16 %v1625, %v1624
        %v1865 = vpack.c.b16 %v1627, %v1626
        %v1866 = vpack.c.b16 %v1629, %v1628
        %v1867 = vpack.c.b16 %v1631, %v1630
        %v1868 = vpack.c.b16 %v1633, %v1632
        %v1869 = vpack.c.b16 %v1635, %v1634
        %v1870 = vpack.c.b16 %v1637, %v1636
        %v1871 = vpack.c.b16 %v1639, %v1638
        %v1872 = vpack.c.b16 %v1641, %v1640
        %v1873 = vpack.c.b16 %v1643, %v1642
        %v1874 = vpack.c.b16 %v1645, %v1644
        %v1875 = vpack.c.b16 %v1647, %v1646
        %v1876 = vpack.c.b16 %v1649, %v1648
        %v1877 = vpack.c.b16 %v1651, %v1650
        %v1878 = vpack.c.b16 %v1653, %v1652
        %v1879 = vpack.c.b16 %v1655, %v1654
        %v1880 = vpack.c.b16 %v1657, %v1656
        %v1881 = vpack.c.b16 %v1659, %v1658
        %v1882 = vpack.c.b16 %v1661, %v1660
        %v1883 = vpack.c.b16 %v1663, %v1662
        %v1884 = vpack.c.b16 %v1665, %v1664
        %v1885 = vpack.c.b16 %v1667, %v1666
        %v1886 = vpack.c.b16 %v1669, %v1668
        %v1887 = vpack.c.b16 %v1671, %v1670
        %v1888 = vpack.c.b16 %v1673, %v1672
        %v1889 = vpack.c.b16 %v1675, %v1674
        %v1890 = vpack.c.b16 %v1677, %v1676
        %v1891 = vpack.c.b16 %v1679, %v1678
        %v1892 = vpack.c.b16 %v1681, %v1680
        %v1893 = vpack.c.b16 %v1683, %v1682
        %v1894 = vpack.c.b16 %v1685, %v1684
        %v1895 = vpack.c.b16 %v1687, %v1686
        %v1896 = vpack.c.b16 %v1689, %v1688
        %v1897 = vpack.c.b16 %v1691, %v1690
        %v1898 = vpack.c.b16 %v1693, %v1692
        %v1899 = vpack.c.b16 %v1695, %v1694
        %v1900 = vpack.c.b16 %v1697, %v1696
        %v1901 = vpack.c.b16 %v1699, %v1698
        %v1902 = vpack.c.b16 %v1701, %v1700
        %v1903 = vpack.c.b16 %v1703, %v1702
        %v1904 = vpack.c.b16 %v1705, %v1704
        %v1905 = vpack.c.b16 %v1707, %v1706
        %v1906 = vpack.c.b16 %v1709, %v1708
        %v1907 = vpack.c.b16 %v1711, %v1710
        %v1908 = vpack.c.b16 %v1713, %v1712
        %v1909 = vpack.c.b16 %v1715, %v1714
        %v1910 = vpack.c.b16 %v1717, %v1716
        %v1911 = vpack.c.b16 %v1719, %v1718
        %2104 = vmatprep.subr.bf16.mxu0 0
        %2105 = vmatpush1.bf16.msra.mxu0 %v1720
        %2106 = vmatprep.subr.bf16.mxu0 0
        %2107 = vmatpush1.bf16.msra.mxu0 %v1721
        %2108 = vmatprep.subr.bf16.mxu0 0
        %2109 = vmatpush1.bf16.msra.mxu0 %v1722
        %2110 = vmatprep.subr.bf16.mxu0 0
        %2111 = vmatpush1.bf16.msra.mxu0 %v1723
        %2112 = vmatprep.subr.bf16.mxu0 0
        %2113 = vmatpush1.bf16.msra.mxu0 %v1724
        %2114 = vmatprep.subr.bf16.mxu0 0
        %2115 = vmatpush1.bf16.msra.mxu0 %v1725
        %2116 = vmatprep.subr.bf16.mxu0 0
        %2117 = vmatpush1.bf16.msra.mxu0 %v1726
        %2118 = vmatprep.subr.bf16.mxu0 0
        %2119 = vmatpush1.bf16.msra.mxu0 %v1727
        %2120 = vmatprep.subr.bf16.mxu0 0
        %2121 = vmatpush1.bf16.msra.mxu0 %v1728
        %2122 = vmatprep.subr.bf16.mxu0 0
        %2123 = vmatpush1.bf16.msra.mxu0 %v1729
        %2124 = vmatprep.subr.bf16.mxu0 0
        %2125 = vmatpush1.bf16.msra.mxu0 %v1730
        %2126 = vmatprep.subr.bf16.mxu0 0
        %2127 = vmatpush1.bf16.msra.mxu0 %v1731
        %2128 = vmatprep.subr.bf16.mxu0 0
        %2129 = vmatpush1.bf16.msra.mxu0 %v1732
        %2130 = vmatprep.subr.bf16.mxu0 0
        %2131 = vmatpush1.bf16.msra.mxu0 %v1733
        %2132 = vmatprep.subr.bf16.mxu0 0
        %2133 = vmatpush1.bf16.msra.mxu0 %v1734
        %2134 = vmatprep.subr.bf16.mxu0 0
        %2135 = vmatpush1.bf16.msra.mxu0 %v1735
        %2136 = vmatprep.mubr.bf16.mxu0 %v818
        %2137 = vmatmul.mubr.bf16.gmra.mrb[0].mxu0 %v804
        %v2138 = vpop.f32.mrb[0].mxu0
        %v2139 = vadd.f32 %v776, %v2138
        %v2140 = vpop.f32.mrb[0].mxu0
        %v2141 = vpop.f32.mrb[0].mxu0
        %v2142 = vpop.f32.mrb[0].mxu0
        %2143 = vdwg.mxu0
        %2144 = vmatprep.subr.bf16.mxu0 0
        %2145 = vmatpush1.bf16.msra.mxu0 %v1736
        %2146 = vmatprep.subr.bf16.mxu0 0
        %2147 = vmatpush1.bf16.msra.mxu0 %v1737
        %2148 = vmatprep.subr.bf16.mxu0 0
        %2149 = vmatpush1.bf16.msra.mxu0 %v1738
        %2150 = vmatprep.subr.bf16.mxu0 0
        %2151 = vmatpush1.bf16.msra.mxu0 %v1739
        %2152 = vmatprep.subr.bf16.mxu0 0
        %2153 = vmatpush1.bf16.msra.mxu0 %v1740
        %2154 = vmatprep.subr.bf16.mxu0 0
        %2155 = vmatpush1.bf16.msra.mxu0 %v1741
        %2156 = vmatprep.subr.bf16.mxu0 0
        %2157 = vmatpush1.bf16.msra.mxu0 %v1742
        %2158 = vmatprep.subr.bf16.mxu0 0
        %2159 = vmatpush1.bf16.msra.mxu0 %v1743
        %2160 = vmatprep.subr.bf16.mxu0 0
        %2161 = vmatpush1.bf16.msra.mxu0 %v1744
        %2162 = vmatprep.subr.bf16.mxu0 0
        %2163 = vmatpush1.bf16.msra.mxu0 %v1745
        %2164 = vmatprep.subr.bf16.mxu0 0
        %2165 = vmatpush1.bf16.msra.mxu0 %v1746
        %2166 = vmatprep.subr.bf16.mxu0 0
        %2167 = vmatpush1.bf16.msra.mxu0 %v1747
        %2168 = vmatprep.subr.bf16.mxu0 0
        %2169 = vmatpush1.bf16.msra.mxu0 %v1748
        %2170 = vmatprep.subr.bf16.mxu0 0
        %2171 = vmatpush1.bf16.msra.mxu0 %v1749
        %2172 = vmatprep.subr.bf16.mxu0 0
        %2173 = vmatpush1.bf16.msra.mxu0 %v1750
        %2174 = vmatprep.subr.bf16.mxu0 0
        %2175 = vmatpush1.bf16.msra.mxu0 %v1751
        %2176 = vmatprep.mubr.bf16.mxu0 %v828
        %2177 = vmatmul.mubr.bf16.gmra.mrb[0].mxu0 %v826
        %v2178 = vpop.f32.mrb[0].mxu0
        %v2179 = vadd.f32 %v2139, %v2178
        %v2180 = vpop.f32.mrb[0].mxu0
        %v2181 = vpop.f32.mrb[0].mxu0
        %v2182 = vpop.f32.mrb[0].mxu0
        %2183 = vdwg.mxu0
        %2184 = vmatprep.subr.bf16.mxu0 0
        %2185 = vmatpush1.bf16.msra.mxu0 %v1752
        %2186 = vmatprep.subr.bf16.mxu0 0
        %2187 = vmatpush1.bf16.msra.mxu0 %v1753
        %2188 = vmatprep.subr.bf16.mxu0 0
        %2189 = vmatpush1.bf16.msra.mxu0 %v1754
        %2190 = vmatprep.subr.bf16.mxu0 0
        %2191 = vmatpush1.bf16.msra.mxu0 %v1755
        %2192 = vmatprep.subr.bf16.mxu0 0
        %2193 = vmatpush1.bf16.msra.mxu0 %v1756
        %2194 = vmatprep.subr.bf16.mxu0 0
        %2195 = vmatpush1.bf16.msra.mxu0 %v1757
        %2196 = vmatprep.subr.bf16.mxu0 0
        %2197 = vmatpush1.bf16.msra.mxu0 %v1758
        %2198 = vmatprep.subr.bf16.mxu0 0
        %2199 = vmatpush1.bf16.msra.mxu0 %v1759
        %2200 = vmatprep.subr.bf16.mxu0 0
        %2201 = vmatpush1.bf16.msra.mxu0 %v1760
        %2202 = vmatprep.subr.bf16.mxu0 0
        %2203 = vmatpush1.bf16.msra.mxu0 %v1761
        %2204 = vmatprep.subr.bf16.mxu0 0
        %2205 = vmatpush1.bf16.msra.mxu0 %v1762
        %2206 = vmatprep.subr.bf16.mxu0 0
        %2207 = vmatpush1.bf16.msra.mxu0 %v1763
        %2208 = vmatprep.subr.bf16.mxu0 0
        %2209 = vmatpush1.bf16.msra.mxu0 %v1764
        %2210 = vmatprep.subr.bf16.mxu0 0
        %2211 = vmatpush1.bf16.msra.mxu0 %v1765
        %2212 = vmatprep.subr.bf16.mxu0 0
        %2213 = vmatpush1.bf16.msra.mxu0 %v1766
        %2214 = vmatprep.subr.bf16.mxu0 0
        %2215 = vmatpush1.bf16.msra.mxu0 %v1767
        %2216 = vmatprep.mubr.bf16.mxu0 %v825
        %2217 = vmatmul.mubr.bf16.gmra.mrb[0].mxu0 %v811
        %v2218 = vpop.f32.mrb[0].mxu0
        %v2219 = vadd.f32 %v2179, %v2218
        %v2220 = vpop.f32.mrb[0].mxu0
        %v2221 = vpop.f32.mrb[0].mxu0
        %v2222 = vpop.f32.mrb[0].mxu0
        %2223 = vdwg.mxu0
        %2224 = vmatprep.subr.bf16.mxu0 0
        %2225 = vmatpush1.bf16.msra.mxu0 %v1768
        %2226 = vmatprep.subr.bf16.mxu0 0
        %2227 = vmatpush1.bf16.msra.mxu0 %v1769
        %2228 = vmatprep.subr.bf16.mxu0 0
        %2229 = vmatpush1.bf16.msra.mxu0 %v1770
        %2230 = vmatprep.subr.bf16.mxu0 0
        %2231 = vmatpush1.bf16.msra.mxu0 %v1771
        %2232 = vmatprep.subr.bf16.mxu0 0
        %2233 = vmatpush1.bf16.msra.mxu0 %v1772
        %2234 = vmatprep.subr.bf16.mxu0 0
        %2235 = vmatpush1.bf16.msra.mxu0 %v1773
        %2236 = vmatprep.subr.bf16.mxu0 0
        %2237 = vmatpush1.bf16.msra.mxu0 %v1774
        %2238 = vmatprep.subr.bf16.mxu0 0
        %2239 = vmatpush1.bf16.msra.mxu0 %v1775
        %2240 = vmatprep.subr.bf16.mxu0 0
        %2241 = vmatpush1.bf16.msra.mxu0 %v1776
        %2242 = vmatprep.subr.bf16.mxu0 0
        %2243 = vmatpush1.bf16.msra.mxu0 %v1777
        %2244 = vmatprep.subr.bf16.mxu0 0
        %2245 = vmatpush1.bf16.msra.mxu0 %v1778
        %2246 = vmatprep.subr.bf16.mxu0 0
        %2247 = vmatpush1.bf16.msra.mxu0 %v1779
        %2248 = vmatprep.subr.bf16.mxu0 0
        %2249 = vmatpush1.bf16.msra.mxu0 %v1780
        %2250 = vmatprep.subr.bf16.mxu0 0
        %2251 = vmatpush1.bf16.msra.mxu0 %v1781
        %2252 = vmatprep.subr.bf16.mxu0 0
        %2253 = vmatpush1.bf16.msra.mxu0 %v1782
        %2254 = vmatprep.subr.bf16.mxu0 0
        %2255 = vmatpush1.bf16.msra.mxu0 %v1783
        %2256 = vmatprep.mubr.bf16.mxu0 %v829
        %2257 = vmatmul.mubr.bf16.gmra.mrb[0].mxu0 %v827
        %v2258 = vpop.f32.mrb[0].mxu0
        %v2259 = vadd.f32 %v2219, %v2258
        %v2260 = vpop.f32.mrb[0].mxu0
        %v2261 = vpop.f32.mrb[0].mxu0
        %v2262 = vpop.f32.mrb[0].mxu0
        %2263 = vdwg.mxu0
        %2264 = vmatprep.subr.bf16.mxu0 0
        %2265 = vmatpush1.bf16.msra.mxu0 %v1784
        %2266 = vmatprep.subr.bf16.mxu0 0
        %2267 = vmatpush1.bf16.msra.mxu0 %v1785
        %2268 = vmatprep.subr.bf16.mxu0 0
        %2269 = vmatpush1.bf16.msra.mxu0 %v1786
        %2270 = vmatprep.subr.bf16.mxu0 0
        %2271 = vmatpush1.bf16.msra.mxu0 %v1787
        %2272 = vmatprep.subr.bf16.mxu0 0
        %2273 = vmatpush1.bf16.msra.mxu0 %v1788
        %2274 = vmatprep.subr.bf16.mxu0 0
        %2275 = vmatpush1.bf16.msra.mxu0 %v1789
        %2276 = vmatprep.subr.bf16.mxu0 0
        %2277 = vmatpush1.bf16.msra.mxu0 %v1790
        %2278 = vmatprep.subr.bf16.mxu0 0
        %2279 = vmatpush1.bf16.msra.mxu0 %v1791
        %2280 = vmatprep.subr.bf16.mxu0 0
        %2281 = vmatpush1.bf16.msra.mxu0 %v1792
        %2282 = vmatprep.subr.bf16.mxu0 0
        %2283 = vmatpush1.bf16.msra.mxu0 %v1793
        %2284 = vmatprep.subr.bf16.mxu0 0
        %2285 = vmatpush1.bf16.msra.mxu0 %v1794
        %2286 = vmatprep.subr.bf16.mxu0 0
        %2287 = vmatpush1.bf16.msra.mxu0 %v1795
        %2288 = vmatprep.subr.bf16.mxu0 0
        %2289 = vmatpush1.bf16.msra.mxu0 %v1796
        %2290 = vmatprep.subr.bf16.mxu0 0
        %2291 = vmatpush1.bf16.msra.mxu0 %v1797
        %2292 = vmatprep.subr.bf16.mxu0 0
        %2293 = vmatpush1.bf16.msra.mxu0 %v1798
        %2294 = vmatprep.subr.bf16.mxu0 0
        %2295 = vmatpush1.bf16.msra.mxu0 %v1799
        %2296 = vmatprep.mubr.bf16.mxu0 %v867
        %2297 = vmatmul.mubr.bf16.gmra.mrb[0].mxu0 %v853
        %v2298 = vpop.f32.mrb[0].mxu0
        %v2299 = vadd.f32 %v2259, %v2298
        %v2300 = vpop.f32.mrb[0].mxu0
        %v2301 = vpop.f32.mrb[0].mxu0
        %v2302 = vpop.f32.mrb[0].mxu0
        %2303 = vdwg.mxu0
        %2304 = vmatprep.subr.bf16.mxu0 0
        %2305 = vmatpush1.bf16.msra.mxu0 %v1800
        %2306 = vmatprep.subr.bf16.mxu0 0
        %2307 = vmatpush1.bf16.msra.mxu0 %v1801
        %2308 = vmatprep.subr.bf16.mxu0 0
        %2309 = vmatpush1.bf16.msra.mxu0 %v1802
        %2310 = vmatprep.subr.bf16.mxu0 0
        %2311 = vmatpush1.bf16.msra.mxu0 %v1803
        %2312 = vmatprep.subr.bf16.mxu0 0
        %2313 = vmatpush1.bf16.msra.mxu0 %v1804
        %2314 = vmatprep.subr.bf16.mxu0 0
        %2315 = vmatpush1.bf16.msra.mxu0 %v1805
        %2316 = vmatprep.subr.bf16.mxu0 0
        %2317 = vmatpush1.bf16.msra.mxu0 %v1806
        %2318 = vmatprep.subr.bf16.mxu0 0
        %2319 = vmatpush1.bf16.msra.mxu0 %v1807
        %2320 = vmatprep.subr.bf16.mxu0 0
        %2321 = vmatpush1.bf16.msra.mxu0 %v1808
        %2322 = vmatprep.subr.bf16.mxu0 0
        %2323 = vmatpush1.bf16.msra.mxu0 %v1809
        %2324 = vmatprep.subr.bf16.mxu0 0
        %2325 = vmatpush1.bf16.msra.mxu0 %v1810
        %2326 = vmatprep.subr.bf16.mxu0 0
        %2327 = vmatpush1.bf16.msra.mxu0 %v1811
        %2328 = vmatprep.subr.bf16.mxu0 0
        %2329 = vmatpush1.bf16.msra.mxu0 %v1812
        %2330 = vmatprep.subr.bf16.mxu0 0
        %2331 = vmatpush1.bf16.msra.mxu0 %v1813
        %2332 = vmatprep.subr.bf16.mxu0 0
        %2333 = vmatpush1.bf16.msra.mxu0 %v1814
        %2334 = vmatprep.subr.bf16.mxu0 0
        %2335 = vmatpush1.bf16.msra.mxu0 %v1815
        %2336 = vmatprep.mubr.bf16.mxu0 %v877
        %2337 = vmatmul.mubr.bf16.gmra.mrb[0].mxu0 %v875
        %v2338 = vpop.f32.mrb[0].mxu0
        %v2339 = vadd.f32 %v2299, %v2338
        %v2340 = vpop.f32.mrb[0].mxu0
        %v2341 = vpop.f32.mrb[0].mxu0
        %v2342 = vpop.f32.mrb[0].mxu0
        %2343 = vdwg.mxu0
        %2344 = vmatprep.subr.bf16.mxu0 0
        %2345 = vmatpush1.bf16.msra.mxu0 %v1816
        %2346 = vmatprep.subr.bf16.mxu0 0
        %2347 = vmatpush1.bf16.msra.mxu0 %v1817
        %2348 = vmatprep.subr.bf16.mxu0 0
        %2349 = vmatpush1.bf16.msra.mxu0 %v1818
        %2350 = vmatprep.subr.bf16.mxu0 0
        %2351 = vmatpush1.bf16.msra.mxu0 %v1819
        %2352 = vmatprep.subr.bf16.mxu0 0
        %2353 = vmatpush1.bf16.msra.mxu0 %v1820
        %2354 = vmatprep.subr.bf16.mxu0 0
        %2355 = vmatpush1.bf16.msra.mxu0 %v1821
        %2356 = vmatprep.subr.bf16.mxu0 0
        %2357 = vmatpush1.bf16.msra.mxu0 %v1822
        %2358 = vmatprep.subr.bf16.mxu0 0
        %2359 = vmatpush1.bf16.msra.mxu0 %v1823
        %2360 = vmatprep.subr.bf16.mxu0 0
        %2361 = vmatpush1.bf16.msra.mxu0 %v1824
        %2362 = vmatprep.subr.bf16.mxu0 0
        %2363 = vmatpush1.bf16.msra.mxu0 %v1825
        %2364 = vmatprep.subr.bf16.mxu0 0
        %2365 = vmatpush1.bf16.msra.mxu0 %v1826
        %2366 = vmatprep.subr.bf16.mxu0 0
        %2367 = vmatpush1.bf16.msra.mxu0 %v1827
        %2368 = vmatprep.subr.bf16.mxu0 0
        %2369 = vmatpush1.bf16.msra.mxu0 %v1828
        %2370 = vmatprep.subr.bf16.mxu0 0
        %2371 = vmatpush1.bf16.msra.mxu0 %v1829
        %2372 = vmatprep.subr.bf16.mxu0 0
        %2373 = vmatpush1.bf16.msra.mxu0 %v1830
        %2374 = vmatprep.subr.bf16.mxu0 0
        %2375 = vmatpush1.bf16.msra.mxu0 %v1831
        %2376 = vmatprep.mubr.bf16.mxu0 %v874
        %2377 = vmatmul.mubr.bf16.gmra.mrb[0].mxu0 %v860
        %v2378 = vpop.f32.mrb[0].mxu0
        %v2379 = vadd.f32 %v2339, %v2378
        %v2380 = vpop.f32.mrb[0].mxu0
        %v2381 = vpop.f32.mrb[0].mxu0
        %v2382 = vpop.f32.mrb[0].mxu0
        %2383 = vdwg.mxu0
        %2384 = vmatprep.subr.bf16.mxu0 0
        %2385 = vmatpush1.bf16.msra.mxu0 %v1832
        %2386 = vmatprep.subr.bf16.mxu0 0
        %2387 = vmatpush1.bf16.msra.mxu0 %v1833
        %2388 = vmatprep.subr.bf16.mxu0 0
        %2389 = vmatpush1.bf16.msra.mxu0 %v1834
        %2390 = vmatprep.subr.bf16.mxu0 0
        %2391 = vmatpush1.bf16.msra.mxu0 %v1835
        %2392 = vmatprep.subr.bf16.mxu0 0
        %2393 = vmatpush1.bf16.msra.mxu0 %v1836
        %2394 = vmatprep.subr.bf16.mxu0 0
        %2395 = vmatpush1.bf16.msra.mxu0 %v1837
        %2396 = vmatprep.subr.bf16.mxu0 0
        %2397 = vmatpush1.bf16.msra.mxu0 %v1838
        %2398 = vmatprep.subr.bf16.mxu0 0
        %2399 = vmatpush1.bf16.msra.mxu0 %v1839
        %2400 = vmatprep.subr.bf16.mxu0 0
        %2401 = vmatpush1.bf16.msra.mxu0 %v1840
        %2402 = vmatprep.subr.bf16.mxu0 0
        %2403 = vmatpush1.bf16.msra.mxu0 %v1841
        %2404 = vmatprep.subr.bf16.mxu0 0
        %2405 = vmatpush1.bf16.msra.mxu0 %v1842
        %2406 = vmatprep.subr.bf16.mxu0 0
        %2407 = vmatpush1.bf16.msra.mxu0 %v1843
        %2408 = vmatprep.subr.bf16.mxu0 0
        %2409 = vmatpush1.bf16.msra.mxu0 %v1844
        %2410 = vmatprep.subr.bf16.mxu0 0
        %2411 = vmatpush1.bf16.msra.mxu0 %v1845
        %2412 = vmatprep.subr.bf16.mxu0 0
        %2413 = vmatpush1.bf16.msra.mxu0 %v1846
        %2414 = vmatprep.subr.bf16.mxu0 0
        %2415 = vmatpush1.bf16.msra.mxu0 %v1847
        %2416 = vmatprep.mubr.bf16.mxu0 %v878
        %2417 = vmatmul.mubr.bf16.gmra.mrb[0].mxu0 %v876
        %v2418 = vpop.f32.mrb[0].mxu0
        %v2419 = vadd.f32 %v2379, %v2418
        %v2420 = vpop.f32.mrb[0].mxu0
        %v2421 = vpop.f32.mrb[0].mxu0
        %v2422 = vpop.f32.mrb[0].mxu0
        %2423 = vdwg.mxu0
        %2424 = vmatprep.subr.bf16.mxu0 0
        %2425 = vmatpush1.bf16.msra.mxu0 %v1848
        %2426 = vmatprep.subr.bf16.mxu0 0
        %2427 = vmatpush1.bf16.msra.mxu0 %v1849
        %2428 = vmatprep.subr.bf16.mxu0 0
        %2429 = vmatpush1.bf16.msra.mxu0 %v1850
        %2430 = vmatprep.subr.bf16.mxu0 0
        %2431 = vmatpush1.bf16.msra.mxu0 %v1851
        %2432 = vmatprep.subr.bf16.mxu0 0
        %2433 = vmatpush1.bf16.msra.mxu0 %v1852
        %2434 = vmatprep.subr.bf16.mxu0 0
        %2435 = vmatpush1.bf16.msra.mxu0 %v1853
        %2436 = vmatprep.subr.bf16.mxu0 0
        %2437 = vmatpush1.bf16.msra.mxu0 %v1854
        %2438 = vmatprep.subr.bf16.mxu0 0
        %2439 = vmatpush1.bf16.msra.mxu0 %v1855
        %2440 = vmatprep.subr.bf16.mxu0 0
        %2441 = vmatpush1.bf16.msra.mxu0 %v1856
        %2442 = vmatprep.subr.bf16.mxu0 0
        %2443 = vmatpush1.bf16.msra.mxu0 %v1857
        %2444 = vmatprep.subr.bf16.mxu0 0
        %2445 = vmatpush1.bf16.msra.mxu0 %v1858
        %2446 = vmatprep.subr.bf16.mxu0 0
        %2447 = vmatpush1.bf16.msra.mxu0 %v1859
        %2448 = vmatprep.subr.bf16.mxu0 0
        %2449 = vmatpush1.bf16.msra.mxu0 %v1860
        %2450 = vmatprep.subr.bf16.mxu0 0
        %2451 = vmatpush1.bf16.msra.mxu0 %v1861
        %2452 = vmatprep.subr.bf16.mxu0 0
        %2453 = vmatpush1.bf16.msra.mxu0 %v1862
        %2454 = vmatprep.subr.bf16.mxu0 0
        %2455 = vmatpush1.bf16.msra.mxu0 %v1863
        %2456 = vmatprep.mubr.bf16.mxu0 %v916
        %2457 = vmatmul.mubr.bf16.gmra.mrb[0].mxu0 %v902
        %v2458 = vpop.f32.mrb[0].mxu0
        %v2459 = vadd.f32 %v2419, %v2458
        %v2460 = vpop.f32.mrb[0].mxu0
        %v2461 = vpop.f32.mrb[0].mxu0
        %v2462 = vpop.f32.mrb[0].mxu0
        %2463 = vdwg.mxu0
        %2464 = vmatprep.subr.bf16.mxu0 0
        %2465 = vmatpush1.bf16.msra.mxu0 %v1864
        %2466 = vmatprep.subr.bf16.mxu0 0
        %2467 = vmatpush1.bf16.msra.mxu0 %v1865
        %2468 = vmatprep.subr.bf16.mxu0 0
        %2469 = vmatpush1.bf16.msra.mxu0 %v1866
        %2470 = vmatprep.subr.bf16.mxu0 0
        %2471 = vmatpush1.bf16.msra.mxu0 %v1867
        %2472 = vmatprep.subr.bf16.mxu0 0
        %2473 = vmatpush1.bf16.msra.mxu0 %v1868
        %2474 = vmatprep.subr.bf16.mxu0 0
        %2475 = vmatpush1.bf16.msra.mxu0 %v1869
        %2476 = vmatprep.subr.bf16.mxu0 0
        %2477 = vmatpush1.bf16.msra.mxu0 %v1870
        %2478 = vmatprep.subr.bf16.mxu0 0
        %2479 = vmatpush1.bf16.msra.mxu0 %v1871
        %2480 = vmatprep.subr.bf16.mxu0 0
        %2481 = vmatpush1.bf16.msra.mxu0 %v1872
        %2482 = vmatprep.subr.bf16.mxu0 0
        %2483 = vmatpush1.bf16.msra.mxu0 %v1873
        %2484 = vmatprep.subr.bf16.mxu0 0
        %2485 = vmatpush1.bf16.msra.mxu0 %v1874
        %2486 = vmatprep.subr.bf16.mxu0 0
        %2487 = vmatpush1.bf16.msra.mxu0 %v1875
        %2488 = vmatprep.subr.bf16.mxu0 0
        %2489 = vmatpush1.bf16.msra.mxu0 %v1876
        %2490 = vmatprep.subr.bf16.mxu0 0
        %2491 = vmatpush1.bf16.msra.mxu0 %v1877
        %2492 = vmatprep.subr.bf16.mxu0 0
        %2493 = vmatpush1.bf16.msra.mxu0 %v1878
        %2494 = vmatprep.subr.bf16.mxu0 0
        %2495 = vmatpush1.bf16.msra.mxu0 %v1879
        %2496 = vmatprep.mubr.bf16.mxu0 %v926
        %2497 = vmatmul.mubr.bf16.gmra.mrb[0].mxu0 %v924
        %v2498 = vpop.f32.mrb[0].mxu0
        %v2499 = vadd.f32 %v2459, %v2498
        %v2500 = vpop.f32.mrb[0].mxu0
        %v2501 = vpop.f32.mrb[0].mxu0
        %v2502 = vpop.f32.mrb[0].mxu0
        %2503 = vdwg.mxu0
        %2504 = vmatprep.subr.bf16.mxu0 0
        %2505 = vmatpush1.bf16.msra.mxu0 %v1880
        %2506 = vmatprep.subr.bf16.mxu0 0
        %2507 = vmatpush1.bf16.msra.mxu0 %v1881
        %2508 = vmatprep.subr.bf16.mxu0 0
        %2509 = vmatpush1.bf16.msra.mxu0 %v1882
        %2510 = vmatprep.subr.bf16.mxu0 0
        %2511 = vmatpush1.bf16.msra.mxu0 %v1883
        %2512 = vmatprep.subr.bf16.mxu0 0
        %2513 = vmatpush1.bf16.msra.mxu0 %v1884
        %2514 = vmatprep.subr.bf16.mxu0 0
        %2515 = vmatpush1.bf16.msra.mxu0 %v1885
        %2516 = vmatprep.subr.bf16.mxu0 0
        %2517 = vmatpush1.bf16.msra.mxu0 %v1886
        %2518 = vmatprep.subr.bf16.mxu0 0
        %2519 = vmatpush1.bf16.msra.mxu0 %v1887
        %2520 = vmatprep.subr.bf16.mxu0 0
        %2521 = vmatpush1.bf16.msra.mxu0 %v1888
        %2522 = vmatprep.subr.bf16.mxu0 0
        %2523 = vmatpush1.bf16.msra.mxu0 %v1889
        %2524 = vmatprep.subr.bf16.mxu0 0
        %2525 = vmatpush1.bf16.msra.mxu0 %v1890
        %2526 = vmatprep.subr.bf16.mxu0 0
        %2527 = vmatpush1.bf16.msra.mxu0 %v1891
        %2528 = vmatprep.subr.bf16.mxu0 0
        %2529 = vmatpush1.bf16.msra.mxu0 %v1892
        %2530 = vmatprep.subr.bf16.mxu0 0
        %2531 = vmatpush1.bf16.msra.mxu0 %v1893
        %2532 = vmatprep.subr.bf16.mxu0 0
        %2533 = vmatpush1.bf16.msra.mxu0 %v1894
        %2534 = vmatprep.subr.bf16.mxu0 0
        %2535 = vmatpush1.bf16.msra.mxu0 %v1895
        %2536 = vmatprep.mubr.bf16.mxu0 %v923
        %2537 = vmatmul.mubr.bf16.gmra.mrb[0].mxu0 %v909
        %v2538 = vpop.f32.mrb[0].mxu0
        %v2539 = vadd.f32 %v2499, %v2538
        %v2540 = vpop.f32.mrb[0].mxu0
        %v2541 = vpop.f32.mrb[0].mxu0
        %v2542 = vpop.f32.mrb[0].mxu0
        %2543 = vdwg.mxu0
        %2544 = vmatprep.subr.bf16.mxu0 0
        %2545 = vmatpush1.bf16.msra.mxu0 %v1896
        %2546 = vmatprep.subr.bf16.mxu0 0
        %2547 = vmatpush1.bf16.msra.mxu0 %v1897
        %2548 = vmatprep.subr.bf16.mxu0 0
        %2549 = vmatpush1.bf16.msra.mxu0 %v1898
        %2550 = vmatprep.subr.bf16.mxu0 0
        %2551 = vmatpush1.bf16.msra.mxu0 %v1899
        %2552 = vmatprep.subr.bf16.mxu0 0
        %2553 = vmatpush1.bf16.msra.mxu0 %v1900
        %2554 = vmatprep.subr.bf16.mxu0 0
        %2555 = vmatpush1.bf16.msra.mxu0 %v1901
        %2556 = vmatprep.subr.bf16.mxu0 0
        %2557 = vmatpush1.bf16.msra.mxu0 %v1902
        %2558 = vmatprep.subr.bf16.mxu0 0
        %2559 = vmatpush1.bf16.msra.mxu0 %v1903
        %2560 = vmatprep.subr.bf16.mxu0 0
        %2561 = vmatpush1.bf16.msra.mxu0 %v1904
        %2562 = vmatprep.subr.bf16.mxu0 0
        %2563 = vmatpush1.bf16.msra.mxu0 %v1905
        %2564 = vmatprep.subr.bf16.mxu0 0
        %2565 = vmatpush1.bf16.msra.mxu0 %v1906
        %2566 = vmatprep.subr.bf16.mxu0 0
        %2567 = vmatpush1.bf16.msra.mxu0 %v1907
        %2568 = vmatprep.subr.bf16.mxu0 0
        %2569 = vmatpush1.bf16.msra.mxu0 %v1908
        %2570 = vmatprep.subr.bf16.mxu0 0
        %2571 = vmatpush1.bf16.msra.mxu0 %v1909
        %2572 = vmatprep.subr.bf16.mxu0 0
        %2573 = vmatpush1.bf16.msra.mxu0 %v1910
        %2574 = vmatprep.subr.bf16.mxu0 0
        %2575 = vmatpush1.bf16.msra.mxu0 %v1911
        %2576 = vmatprep.mubr.bf16.mxu0 %v927
        %2577 = vmatmul.mubr.bf16.gmra.mrb[0].mxu0 %v925
        %v2578 = vpop.f32.mrb[0].mxu0
        %v2579 = vadd.f32 %v2539, %v2578
        %v2580 = vpop.f32.mrb[0].mxu0
        %v2581 = vpop.f32.mrb[0].mxu0
        %v2582 = vpop.f32.mrb[0].mxu0
        %2583 = vdwg.mxu0
        %v2584 = vmax.f32 %v2579, 0.0
        %v2585 = vld [vmem:[%s330] sm:$0xff]
        %v2586 = vld [vmem:[%s330 + $0x8] sm:$0xff]
        %v2587 = vld [vmem:[%s330 + $0x10] sm:$0xff]
        %v2588 = vld [vmem:[%s330 + $0x18] sm:$0xff]
        %v2589 = vld [vmem:[%s330 + $0x20] sm:$0xff]
        %v2590 = vld [vmem:[%s330 + $0x28] sm:$0xff]
        %v2591 = vld [vmem:[%s330 + $0x30] sm:$0xff]
        %v2592 = vld [vmem:[%s330 + $0x38] sm:$0xff]
        %v2593 = vld [vmem:[%s330 + $0x40] sm:$0xff]
        %v2594 = vld [vmem:[%s330 + $0x48] sm:$0xff]
        %v2595 = vld [vmem:[%s330 + $0x50] sm:$0xff]
        %v2596 = vld [vmem:[%s330 + $0x58] sm:$0xff]
        %v2597 = vld [vmem:[%s330 + $0x60] sm:$0xff]
        %v2598 = vld [vmem:[%s330 + $0x68] sm:$0xff]
        %v2599 = vld [vmem:[%s330 + $0x70] sm:$0xff]
        %v2600 = vld [vmem:[%s330 + $0x78] sm:$0xff]
        %v2601 = vld [vmem:[%s338] sm:$0x1]
        %v2603 = vlaneseq
        %v2604 = vshrl.u32 %v2603, 7
        %v2605 = vsub.s32 0, %v2604
        %v2606 = vrot.slane %v2601, %v2605
        %2608 = vmatprep.subr.mxu0 0.0
        %2609 = vmatpush1.msra.mxu0 %v2585
        %2610 = vmatprep.subr.mxu0 0.0
        %2611 = vmatpush1.msra.mxu0 %v2586
        %2612 = vmatprep.subr.mxu0 0.0
        %2613 = vmatpush1.msra.mxu0 %v2587
        %2614 = vmatprep.subr.mxu0 0.0
        %2615 = vmatpush1.msra.mxu0 %v2588
        %2616 = vmatprep.subr.mxu0 0.0
        %2617 = vmatpush1.msra.mxu0 %v2589
        %2618 = vmatprep.subr.mxu0 0.0
        %2619 = vmatpush1.msra.mxu0 %v2590
        %2620 = vmatprep.subr.mxu0 0.0
        %2621 = vmatpush1.msra.mxu0 %v2591
        %2622 = vmatprep.subr.mxu0 0.0
        %2623 = vmatpush1.msra.mxu0 %v2592
        %2624 = vmatprep.subr.mxu0 0.0
        %2625 = vmatpush1.msra.mxu0 %v2593
        %2626 = vmatprep.subr.mxu0 0.0
        %2627 = vmatpush1.msra.mxu0 %v2594
        %2628 = vmatprep.subr.mxu0 0.0
        %2629 = vmatpush1.msra.mxu0 %v2595
        %2630 = vmatprep.subr.mxu0 0.0
        %2631 = vmatpush1.msra.mxu0 %v2596
        %2632 = vmatprep.subr.mxu0 0.0
        %2633 = vmatpush1.msra.mxu0 %v2597
        %2634 = vmatprep.subr.mxu0 0.0
        %2635 = vmatpush1.msra.mxu0 %v2598
        %2636 = vmatprep.subr.mxu0 0.0
        %2637 = vmatpush1.msra.mxu0 %v2599
        %2638 = vmatprep.subr.mxu0 0.0
        %2639 = vmatpush1.msra.mxu0 %v2600
        %2640 = vmatprep.subr.mxu0 0.0
        %2641 = vmatpush1.msra.mxu0 0.0
        %2642 = vmatprep.subr.mxu0 0.0
        %2643 = vmatpush1.msra.mxu0 0.0
        %2644 = vmatprep.subr.mxu0 0.0
        %2645 = vmatpush1.msra.mxu0 0.0
        %2646 = vmatprep.subr.mxu0 0.0
        %2647 = vmatpush1.msra.mxu0 0.0
        %2648 = vmatprep.subr.mxu0 0.0
        %2649 = vmatpush1.msra.mxu0 0.0
        %2650 = vmatprep.subr.mxu0 0.0
        %2651 = vmatpush1.msra.mxu0 0.0
        %2652 = vmatprep.subr.mxu0 0.0
        %2653 = vmatpush1.msra.mxu0 0.0
        %2654 = vmatprep.subr.mxu0 0.0
        %2655 = vmatpush1.msra.mxu0 0.0
        %2656 = vmatprep.subr.mxu0 0.0
        %2657 = vmatpush1.msra.mxu0 0.0
        %2658 = vmatprep.subr.mxu0 0.0
        %2659 = vmatpush1.msra.mxu0 0.0
        %2660 = vmatprep.subr.mxu0 0.0
        %2661 = vmatpush1.msra.mxu0 0.0
        %2662 = vmatprep.subr.mxu0 0.0
        %2663 = vmatpush1.msra.mxu0 0.0
        %2664 = vmatprep.subr.mxu0 0.0
        %2665 = vmatpush1.msra.mxu0 0.0
        %2666 = vmatprep.subr.mxu0 0.0
        %2667 = vmatpush1.msra.mxu0 0.0
        %2668 = vmatprep.subr.mxu0 0.0
        %2669 = vmatpush1.msra.mxu0 0.0
        %2670 = vmatprep.subr.mxu0 0.0
        %2671 = vmatpush1.msra.mxu0 0.0
        %2672 = vmatprep.mubr.f32.mxu0 0.0
        %2673 = vmatmul.mubr.f32.gmra.mrb[0].mxu0 %v2584
        %v2674 = vpop.f32.mrb[0].mxu0
        %v2675 = vadd.f32 %v2606, %v2674
        %v2676 = vpop.f32.mrb[0].mxu0
        %2677 = vdwg.mxu0
        %2678 = vst [vmem:[%s382] sm:$0x3] %v2675
        %s2679 = sand.u32 %s166, 1
        %s2680 = scalar_lea.sflag [#allocation4], %s2679
        %s2681 = sand.u32 %s166, 1
        %s2682 = smul.addr %s2681, 2
        %s2683 = scalar_lea.vmem [#allocation11], %s2682
        // Predicated region
        $region61: #{tpu_custom_call.1} parent=39 // pred_check
          %p2684 = pneg %p176
        $region62: #{tpu_custom_call.1} parent=39 // pred_check_branch
          %2686 = sbr.rel (%p2684) target = $region64
        $region63: #{tpu_custom_call.1} parent=39 // pred_region
          %s2688 = ssub.s32 32, 32
          %2689 = vsyncadd %s2680, %s2688
          %s2690 = smul.addr %s28, 32
          %s2691 = scalar_lea.hbm %s5, %s2690
          %s2693 = sshll.u32 %s2683, 4
          %s2694 = int_to_ptr.vmem [resolvable:$true] %s2693
          %2696 = dma.vmem_to_hbm [thread:$0]  %s2694, 32, %s2691, %s2680
        $region64: #{tpu_custom_call.1} parent=39 // pred_fallthru
          _
      $region40: #{tpu_custom_call.1} parent=5 // pred_fallthru
        _
      %p2697 = scmp.le.s32.totalorder 2, %s23
      // Predicated region
      $region65: #{tpu_custom_call.1} parent=5 // pred_check
        %p2698 = pneg %p2697
      $region66: #{tpu_custom_call.1} parent=5 // pred_check_branch
        %2700 = sbr.rel (%p2698) target = $region68
      $region67: #{tpu_custom_call.1} parent=5 // pred_region
        %s2701 = ssub.s32 %s23, 2
        // Predicated region
        $region69: #{tpu_custom_call.1} parent=67 // pred_check
          %p2702 = pneg %p182
        $region70: #{tpu_custom_call.1} parent=67 // pred_check_branch
          %2704 = sbr.rel (%p2702) target = $region72
        $region71: #{tpu_custom_call.1} parent=67 // pred_region
          %s2705 = sand.u32 %s167, 1
          %s2706 = scalar_lea.sflag [#allocation4], %s2705
          %s2707 = sand.u32 %s167, 1
          %s2708 = smul.addr %s2707, 2
          %s2709 = scalar_lea.vmem [#allocation11], %s2708
          %2710 = dma.done %s2706, 32
        $region72: #{tpu_custom_call.1} parent=67 // pred_fallthru
          _
      $region68: #{tpu_custom_call.1} parent=5 // pred_fallthru
        _
    $region6: #{tpu_custom_call.1} parent=1 // loop_footer
      %s27 = sadd.s32 1, %s23
    $region7: #{tpu_custom_call.1} parent=1 // loop_footer_branch
      %22 = sbr.rel target = $region3
    $region8: #{tpu_custom_call.1} parent=1 // loop_exit
      _
    %2711 = vsyncpa [#allocation3], 1
    %s2712 = scalar_lea.sflag [#allocation3], 1
    %2713 = vsyncpa %s2712, 1
    %2714 = vsyncpa [#allocation6], 1
    %s2715 = scalar_lea.sflag [#allocation6], 1
    %2716 = vsyncpa %s2715, 1
    %2717 = vsyncpa [#allocation9], 1
    %s2718 = scalar_lea.sflag [#allocation9], 1
    %2719 = vsyncpa %s2718, 1
    %2720 = vsyncpa [#allocation4], 1
    %s2721 = scalar_lea.sflag [#allocation4], 1
    %2722 = vsyncpa %s2721, 1

</llo_original>
